<compile_context>
chip_gen: v7x
topology: tpu7x:2x2x1
jax: 0.10.0
libtpu: 0.0.40
codegen_flags: <defaults>
</compile_context>

<pallas_src>
import functools

import jax
import jax.numpy as jnp
from jax.experimental import pallas as pl
from jax.experimental.pallas import tpu as pltpu

LN_EPS = 1e-5


def _layernorm(x, gamma, beta):
    # x: (S, D) f32; gamma/beta: (1, D) f32
    mu = jnp.mean(x, axis=-1, keepdims=True)
    xc = x - mu
    var = jnp.mean(xc * xc, axis=-1, keepdims=True)
    return xc * jax.lax.rsqrt(var + LN_EPS) * gamma + beta


def _encoder_block_kernel(num_heads, apply_final_ln, *refs):
    if apply_final_ln:
        (x_ref,
         ln1_g_ref, ln1_b_ref,
         wq_ref, bq_ref, wk_ref, bk_ref, wv_ref, bv_ref,
         wo_ref, bo_ref,
         ln2_g_ref, ln2_b_ref,
         w1_ref, b1_ref, w2_ref, b2_ref,
         fln_g_ref, fln_b_ref,
         o_ref) = refs
    else:
        (x_ref,
         ln1_g_ref, ln1_b_ref,
         wq_ref, bq_ref, wk_ref, bk_ref, wv_ref, bv_ref,
         wo_ref, bo_ref,
         ln2_g_ref, ln2_b_ref,
         w1_ref, b1_ref, w2_ref, b2_ref,
         o_ref) = refs
        fln_g_ref = fln_b_ref = None

    x = x_ref[0].astype(jnp.float32)                       # (S, D)
    S, D = x.shape
    H = num_heads
    dh = D // H
    scale = 1.0 / float(dh) ** 0.5

    # ---- sublayer 0: LayerNorm -> MultiHeadAttention -> residual ----------
    xn = _layernorm(x, ln1_g_ref[...], ln1_b_ref[...])
    # Head-batched lhs; bf16 operands for the MXU, f32 accumulation.
    xb = jnp.broadcast_to(xn.astype(jnp.bfloat16)[None, :, :], (H, S, D))

    q = jnp.einsum('hsd,hde->hse', xb, wq_ref[...],
                   preferred_element_type=jnp.float32) + bq_ref[...]
    k = jnp.einsum('hsd,hde->hse', xb, wk_ref[...],
                   preferred_element_type=jnp.float32) + bk_ref[...]
    v = jnp.einsum('hsd,hde->hse', xb, wv_ref[...],
                   preferred_element_type=jnp.float32) + bv_ref[...]

    qh = (q * scale).astype(jnp.bfloat16)                  # scale the small tensor
    kh = k.astype(jnp.bfloat16)
    vh = v.astype(jnp.bfloat16)

    s = jnp.einsum('hqd,hkd->hqk', qh, kh,
                   preferred_element_type=jnp.float32)     # (H, S, S) f32
    m = jnp.max(s, axis=-1, keepdims=True)
    p = jnp.exp(s - m)
    denom = jnp.sum(p, axis=-1, keepdims=True)
    p = p * pl.reciprocal(denom, approx=True)              # EUP, not a VALU divide

    ao = jnp.einsum('hqk,hkd->hqd', p.astype(jnp.bfloat16), vh,
                    preferred_element_type=jnp.float32)    # (H, S, dh)

    # Head concat folded into per-head output projection + sum over heads.
    proj = jnp.einsum('hsd,hde->hse', ao.astype(jnp.bfloat16), wo_ref[...],
                      preferred_element_type=jnp.float32)  # (H, S, D)
    attn = jnp.sum(proj, axis=0) + bo_ref[...]             # (S, D)
    x = x + attn

    # ---- sublayer 1: LayerNorm -> PositionwiseFeedForward -> residual -----
    yn = _layernorm(x, ln2_g_ref[...], ln2_b_ref[...])
    h1 = jnp.dot(yn.astype(jnp.bfloat16), w1_ref[...],
                 preferred_element_type=jnp.float32) + b1_ref[...]
    h1 = jnp.maximum(h1, 0.0)                              # ReLU (f32)
    h2 = jnp.dot(h1.astype(jnp.bfloat16), w2_ref[...],
                 preferred_element_type=jnp.float32) + b2_ref[...]
    x = x + h2

    # Final encoder LayerNorm fused into the last block's kernel.
    if apply_final_ln:
        x = _layernorm(x, fln_g_ref[...], fln_b_ref[...])

    o_ref[0] = x.astype(o_ref.dtype)


def _final_ln_kernel(x_ref, g_ref, b_ref, o_ref):
    # Only used for the degenerate num_blocks == 0 case.
    o_ref[0] = _layernorm(x_ref[0].astype(jnp.float32),
                          g_ref[...], b_ref[...]).astype(o_ref.dtype)


def _full_spec(shape):
    zeros = (0,) * len(shape)
    return pl.BlockSpec(shape, lambda b, _z=zeros: _z)


_PARAM_ORDER = ("ln1_g", "ln1_b", "wq", "bq", "wk", "bk", "wv", "bv",
                "wo", "bo", "ln2_g", "ln2_b", "w1", "b1", "w2", "b2")


def prep_block_params(params, num_heads):
    """Pre-reshape / cast weights outside the kernel: head-major, bf16 matmul ops."""
    D = params["wq"].shape[0]
    dh = D // num_heads

    def head_w(w):          # (D, D) -> (H, D, dh), bf16
        return jnp.transpose(w.reshape(D, num_heads, dh), (1, 0, 2)).astype(jnp.bfloat16)

    def head_b(b):          # (1, D) -> (H, 1, dh), f32
        return b.reshape(num_heads, 1, dh).astype(jnp.float32)

    out = dict(params)
    out["wq"] = head_w(params["wq"]); out["bq"] = head_b(params["bq"])
    out["wk"] = head_w(params["wk"]); out["bk"] = head_b(params["bk"])
    out["wv"] = head_w(params["wv"]); out["bv"] = head_b(params["bv"])
    out["wo"] = params["wo"].reshape(num_heads, dh, D).astype(jnp.bfloat16)
    out["w1"] = params["w1"].astype(jnp.bfloat16)
    out["w2"] = params["w2"].astype(jnp.bfloat16)
    return out


def encoder_block_apply(x, prepped, num_heads, final_ln=None):
    B, S, D = x.shape
    args = [x]
    in_specs = [pl.BlockSpec((1, S, D), lambda b: (b, 0, 0))]
    for name in _PARAM_ORDER:
        p = prepped[name]
        args.append(p)
        in_specs.append(_full_spec(p.shape))
    apply_final_ln = final_ln is not None
    if apply_final_ln:
        for p in final_ln:
            args.append(p)
            in_specs.append(_full_spec(p.shape))

    kernel = functools.partial(_encoder_block_kernel, num_heads, apply_final_ln)
    return pl.pallas_call(
        kernel,
        out_shape=jax.ShapeDtypeStruct((B, S, D), x.dtype),
        grid=(B,),
        in_specs=in_specs,
        out_specs=pl.BlockSpec((1, S, D), lambda b: (b, 0, 0)),
        compiler_params=pltpu.CompilerParams(
            dimension_semantics=("parallel",),
            vmem_limit_bytes=32 * 1024 * 1024),
    )(*args)


def final_layernorm_apply(x, gamma, beta):
    B, S, D = x.shape
    return pl.pallas_call(
        _final_ln_kernel,
        out_shape=jax.ShapeDtypeStruct((B, S, D), x.dtype),
        grid=(B,),
        in_specs=[pl.BlockSpec((1, S, D), lambda b: (b, 0, 0)),
                  _full_spec(gamma.shape),
                  _full_spec(beta.shape)],
        out_specs=pl.BlockSpec((1, S, D), lambda b: (b, 0, 0)),
        compiler_params=pltpu.CompilerParams(dimension_semantics=("parallel",)),
    )(x, gamma, beta)


def init_encoder_params(key, num_blocks, dim_embed, dim_ff):
    """Deterministic synthetic parameter init (PyTorch-like uniform fan-in)."""
    def linear(k, d_in, d_out):
        kw, kb = jax.random.split(k)
        bound = 1.0 / (d_in ** 0.5)
        w = jax.random.uniform(kw, (d_in, d_out), jnp.float32, -bound, bound)
        b = jax.random.uniform(kb, (1, d_out), jnp.float32, -bound, bound)
        return w, b

    blocks = []
    keys = jax.random.split(key, num_blocks + 1)
    for bi in range(num_blocks):
        ks = jax.random.split(keys[bi], 6)
        wq, bq = linear(ks[0], dim_embed, dim_embed)
        wk, bk = linear(ks[1], dim_embed, dim_embed)
        wv, bv = linear(ks[2], dim_embed, dim_embed)
        wo, bo = linear(ks[3], dim_embed, dim_embed)
        w1, b1 = linear(ks[4], dim_embed, dim_ff)
        w2, b2 = linear(ks[5], dim_ff, dim_embed)
        blocks.append(dict(
            ln1_g=jnp.ones((1, dim_embed), jnp.float32),
            ln1_b=jnp.zeros((1, dim_embed), jnp.float32),
            wq=wq, bq=bq, wk=wk, bk=bk, wv=wv, bv=bv, wo=wo, bo=bo,
            ln2_g=jnp.ones((1, dim_embed), jnp.float32),
            ln2_b=jnp.zeros((1, dim_embed), jnp.float32),
            w1=w1, b1=b1, w2=w2, b2=b2,
        ))
    final = dict(g=jnp.ones((1, dim_embed), jnp.float32),
                 b=jnp.zeros((1, dim_embed), jnp.float32))
    return blocks, final


def encoder_forward(x, block_params, final_params, num_heads):
    n = len(block_params)
    if n == 0:
        return final_layernorm_apply(x, final_params["g"], final_params["b"])
    prepped = [prep_block_params(p, num_heads) for p in block_params]
    for i, p in enumerate(prepped):
        is_last = (i == n - 1)
        fln = (final_params["g"], final_params["b"]) if is_last else None
        x = encoder_block_apply(x, p, num_heads, final_ln=fln)
    return x


if __name__ == "__main__":
    # Small shapes consistent with the module: (batch, seq, dim_embed)
    num_blocks, num_heads, dim_embed, dim_ff = 2, 4, 32, 64
    B, S = 2, 8

    key = jax.random.PRNGKey(0)
    kx, kp = jax.random.split(key)
    x = jax.random.normal(kx, (B, S, dim_embed), dtype=jnp.float32)

    block_params, final_params = init_encoder_params(kp, num_blocks, dim_embed, dim_ff)

    out = encoder_forward(x, block_params, final_params, num_heads)
    out = jax.block_until_ready(out)
    assert out.shape == (B, S, dim_embed)
    assert bool(jnp.all(jnp.isfinite(out)))
    print("KERNEL_OK")
</pallas_src>

<mosaic_0001>
module attributes {stable_mosaic.version = 11 : i64} {
  func.func @_encoder_block_kernel(%arg0: i32, %arg1: memref<1x8x32xf32, #tpu.memory_space<vmem>>, %arg2: memref<1x32xf32, #tpu.memory_space<vmem>>, %arg3: memref<1x32xf32, #tpu.memory_space<vmem>>, %arg4: memref<4x32x8xbf16, #tpu.memory_space<vmem>>, %arg5: memref<4x1x8xf32, #tpu.memory_space<vmem>>, %arg6: memref<4x32x8xbf16, #tpu.memory_space<vmem>>, %arg7: memref<4x1x8xf32, #tpu.memory_space<vmem>>, %arg8: memref<4x32x8xbf16, #tpu.memory_space<vmem>>, %arg9: memref<4x1x8xf32, #tpu.memory_space<vmem>>, %arg10: memref<4x8x32xbf16, #tpu.memory_space<vmem>>, %arg11: memref<1x32xf32, #tpu.memory_space<vmem>>, %arg12: memref<1x32xf32, #tpu.memory_space<vmem>>, %arg13: memref<1x32xf32, #tpu.memory_space<vmem>>, %arg14: memref<32x64xbf16, #tpu.memory_space<vmem>>, %arg15: memref<1x64xf32, #tpu.memory_space<vmem>>, %arg16: memref<64x32xbf16, #tpu.memory_space<vmem>>, %arg17: memref<1x32xf32, #tpu.memory_space<vmem>>, %arg18: memref<1x8x32xf32, #tpu.memory_space<vmem>>) attributes {dimension_semantics = [#tpu.dimension_semantics<parallel>], iteration_bounds = array<i64: 2>, scalar_prefetch = 0 : i64, scratch_operands = 0 : i64, tpu.core_type = #tpu.core_type<tc>, window_params = [{transform_indices = @transform_0, window_bounds = array<i64: 1, 8, 32>}, {pipeline_mode = #tpu.pipeline_mode<synchronous>, transform_indices = @transform_1, window_bounds = array<i64: 1, 32>}, {pipeline_mode = #tpu.pipeline_mode<synchronous>, transform_indices = @transform_2, window_bounds = array<i64: 1, 32>}, {pipeline_mode = #tpu.pipeline_mode<synchronous>, transform_indices = @transform_3, window_bounds = array<i64: 4, 32, 8>}, {pipeline_mode = #tpu.pipeline_mode<synchronous>, transform_indices = @transform_4, window_bounds = array<i64: 4, 1, 8>}, {pipeline_mode = #tpu.pipeline_mode<synchronous>, transform_indices = @transform_5, window_bounds = array<i64: 4, 32, 8>}, {pipeline_mode = #tpu.pipeline_mode<synchronous>, transform_indices = @transform_6, window_bounds = array<i64: 4, 1, 8>}, {pipeline_mode = #tpu.pipeline_mode<synchronous>, transform_indices = @transform_7, window_bounds = array<i64: 4, 32, 8>}, {pipeline_mode = #tpu.pipeline_mode<synchronous>, transform_indices = @transform_8, window_bounds = array<i64: 4, 1, 8>}, {pipeline_mode = #tpu.pipeline_mode<synchronous>, transform_indices = @transform_9, window_bounds = array<i64: 4, 8, 32>}, {pipeline_mode = #tpu.pipeline_mode<synchronous>, transform_indices = @transform_10, window_bounds = array<i64: 1, 32>}, {pipeline_mode = #tpu.pipeline_mode<synchronous>, transform_indices = @transform_11, window_bounds = array<i64: 1, 32>}, {pipeline_mode = #tpu.pipeline_mode<synchronous>, transform_indices = @transform_12, window_bounds = array<i64: 1, 32>}, {pipeline_mode = #tpu.pipeline_mode<synchronous>, transform_indices = @transform_13, window_bounds = array<i64: 32, 64>}, {pipeline_mode = #tpu.pipeline_mode<synchronous>, transform_indices = @transform_14, window_bounds = array<i64: 1, 64>}, {pipeline_mode = #tpu.pipeline_mode<synchronous>, transform_indices = @transform_15, window_bounds = array<i64: 64, 32>}, {pipeline_mode = #tpu.pipeline_mode<synchronous>, transform_indices = @transform_16, window_bounds = array<i64: 1, 32>}, {transform_indices = @transform_17, window_bounds = array<i64: 1, 8, 32>}]} {
    %c0 = arith.constant 0 : index
    %c0_0 = arith.constant 0 : index
    %c0_1 = arith.constant 0 : index
    %0 = vector.load %arg1[%c0, %c0_0, %c0_1] : memref<1x8x32xf32, #tpu.memory_space<vmem>>, vector<1x8x32xf32>
    %1 = vector.shape_cast %0 : vector<1x8x32xf32> to vector<8x32xf32>
    %c0_2 = arith.constant 0 : index
    %c0_3 = arith.constant 0 : index
    %2 = vector.load %arg2[%c0_2, %c0_3] : memref<1x32xf32, #tpu.memory_space<vmem>>, vector<1x32xf32>
    %c0_4 = arith.constant 0 : index
    %c0_5 = arith.constant 0 : index
    %3 = vector.load %arg3[%c0_4, %c0_5] : memref<1x32xf32, #tpu.memory_space<vmem>>, vector<1x32xf32>
    %cst = arith.constant dense<0.000000e+00> : vector<8xf32>
    %4 = vector.multi_reduction <add>, %1, %cst [1] : vector<8x32xf32> to vector<8xf32>
    %5 = vector.shape_cast %4 : vector<8xf32> to vector<8x1xf32>
    %cst_6 = arith.constant 3.200000e+01 : f32
    %6 = vector.broadcast %cst_6 : f32 to vector<8x1xf32>
    %7 = arith.divf %5, %6 : vector<8x1xf32>
    %8 = vector.broadcast %7 : vector<8x1xf32> to vector<8x32xf32>
    %9 = arith.subf %1, %8 : vector<8x32xf32>
    %10 = arith.mulf %9, %9 : vector<8x32xf32>
    %cst_7 = arith.constant dense<0.000000e+00> : vector<8xf32>
    %11 = vector.multi_reduction <add>, %10, %cst_7 [1] : vector<8x32xf32> to vector<8xf32>
    %12 = vector.shape_cast %11 : vector<8xf32> to vector<8x1xf32>
    %cst_8 = arith.constant 3.200000e+01 : f32
    %13 = vector.broadcast %cst_8 : f32 to vector<8x1xf32>
    %14 = arith.divf %12, %13 : vector<8x1xf32>
    %cst_9 = arith.constant 9.99999974E-6 : f32
    %15 = vector.broadcast %cst_9 : f32 to vector<8x1xf32>
    %16 = arith.addf %14, %15 : vector<8x1xf32>
    %17 = math.rsqrt %16 : vector<8x1xf32>
    %18 = vector.broadcast %17 : vector<8x1xf32> to vector<8x32xf32>
    %19 = arith.mulf %9, %18 : vector<8x32xf32>
    %20 = vector.broadcast %2 : vector<1x32xf32> to vector<8x32xf32>
    %21 = arith.mulf %19, %20 : vector<8x32xf32>
    %22 = vector.broadcast %3 : vector<1x32xf32> to vector<8x32xf32>
    %23 = arith.addf %21, %22 : vector<8x32xf32>
    %24 = arith.truncf %23 : vector<8x32xf32> to vector<8x32xbf16>
    %25 = vector.shape_cast %24 : vector<8x32xbf16> to vector<1x8x32xbf16>
    %26 = vector.shape_cast %25 : vector<1x8x32xbf16> to vector<1x8x32xbf16>
    %27 = vector.broadcast %26 : vector<1x8x32xbf16> to vector<4x8x32xbf16>
    %c0_10 = arith.constant 0 : index
    %c0_11 = arith.constant 0 : index
    %c0_12 = arith.constant 0 : index
    %28 = vector.load %arg4[%c0_10, %c0_11, %c0_12] : memref<4x32x8xbf16, #tpu.memory_space<vmem>>, vector<4x32x8xbf16>
    "tpu.trace_start"() <{level = 10 : i32, message = "hsd,hde->hse"}> : () -> ()
    %cst_13 = arith.constant dense<0.000000e+00> : vector<4x8x8xf32>
    %29 = tpu.matmul %27, %28, %cst_13 {dimension_numbers = #tpu.dot_dimension_numbers<[2], [1], [1], [2], [0, 0, 0, 1, 1, 2], [0], [0]>} : vector<4x8x32xbf16>, vector<4x32x8xbf16>, vector<4x8x8xf32> -> vector<4x8x8xf32>
    "tpu.trace_stop"() : () -> ()
    %c0_14 = arith.constant 0 : index
    %c0_15 = arith.constant 0 : index
    %c0_16 = arith.constant 0 : index
    %30 = vector.load %arg5[%c0_14, %c0_15, %c0_16] : memref<4x1x8xf32, #tpu.memory_space<vmem>>, vector<4x1x8xf32>
    %31 = vector.broadcast %30 : vector<4x1x8xf32> to vector<4x8x8xf32>
    %32 = arith.addf %29, %31 : vector<4x8x8xf32>
    %c0_17 = arith.constant 0 : index
    %c0_18 = arith.constant 0 : index
    %c0_19 = arith.constant 0 : index
    %33 = vector.load %arg6[%c0_17, %c0_18, %c0_19] : memref<4x32x8xbf16, #tpu.memory_space<vmem>>, vector<4x32x8xbf16>
    "tpu.trace_start"() <{level = 10 : i32, message = "hsd,hde->hse"}> : () -> ()
    %cst_20 = arith.constant dense<0.000000e+00> : vector<4x8x8xf32>
    %34 = tpu.matmul %27, %33, %cst_20 {dimension_numbers = #tpu.dot_dimension_numbers<[2], [1], [1], [2], [0, 0, 0, 1, 1, 2], [0], [0]>} : vector<4x8x32xbf16>, vector<4x32x8xbf16>, vector<4x8x8xf32> -> vector<4x8x8xf32>
    "tpu.trace_stop"() : () -> ()
    %c0_21 = arith.constant 0 : index
    %c0_22 = arith.constant 0 : index
    %c0_23 = arith.constant 0 : index
    %35 = vector.load %arg7[%c0_21, %c0_22, %c0_23] : memref<4x1x8xf32, #tpu.memory_space<vmem>>, vector<4x1x8xf32>
    %36 = vector.broadcast %35 : vector<4x1x8xf32> to vector<4x8x8xf32>
    %37 = arith.addf %34, %36 : vector<4x8x8xf32>
    %c0_24 = arith.constant 0 : index
    %c0_25 = arith.constant 0 : index
    %c0_26 = arith.constant 0 : index
    %38 = vector.load %arg8[%c0_24, %c0_25, %c0_26] : memref<4x32x8xbf16, #tpu.memory_space<vmem>>, vector<4x32x8xbf16>
    "tpu.trace_start"() <{level = 10 : i32, message = "hsd,hde->hse"}> : () -> ()
    %cst_27 = arith.constant dense<0.000000e+00> : vector<4x8x8xf32>
    %39 = tpu.matmul %27, %38, %cst_27 {dimension_numbers = #tpu.dot_dimension_numbers<[2], [1], [1], [2], [0, 0, 0, 1, 1, 2], [0], [0]>} : vector<4x8x32xbf16>, vector<4x32x8xbf16>, vector<4x8x8xf32> -> vector<4x8x8xf32>
    "tpu.trace_stop"() : () -> ()
    %c0_28 = arith.constant 0 : index
    %c0_29 = arith.constant 0 : index
    %c0_30 = arith.constant 0 : index
    %40 = vector.load %arg9[%c0_28, %c0_29, %c0_30] : memref<4x1x8xf32, #tpu.memory_space<vmem>>, vector<4x1x8xf32>
    %41 = vector.broadcast %40 : vector<4x1x8xf32> to vector<4x8x8xf32>
    %42 = arith.addf %39, %41 : vector<4x8x8xf32>
    %cst_31 = arith.constant 0.353553385 : f32
    %43 = vector.broadcast %cst_31 : f32 to vector<4x8x8xf32>
    %44 = arith.mulf %32, %43 : vector<4x8x8xf32>
    %45 = arith.truncf %44 : vector<4x8x8xf32> to vector<4x8x8xbf16>
    %46 = arith.truncf %37 : vector<4x8x8xf32> to vector<4x8x8xbf16>
    %47 = arith.truncf %42 : vector<4x8x8xf32> to vector<4x8x8xbf16>
    "tpu.trace_start"() <{level = 10 : i32, message = "hqd,hkd->hqk"}> : () -> ()
    %cst_32 = arith.constant dense<0.000000e+00> : vector<4x8x8xf32>
    %48 = tpu.matmul %45, %46, %cst_32 {dimension_numbers = #tpu.dot_dimension_numbers<[2], [2], [1], [1], [0, 0, 0, 1, 1, 1], [0], [0]>} : vector<4x8x8xbf16>, vector<4x8x8xbf16>, vector<4x8x8xf32> -> vector<4x8x8xf32>
    "tpu.trace_stop"() : () -> ()
    %cst_33 = arith.constant dense<0xFF800000> : vector<4x8xf32>
    %49 = vector.multi_reduction <maximumf>, %48, %cst_33 [2] : vector<4x8x8xf32> to vector<4x8xf32>
    %50 = vector.shape_cast %49 : vector<4x8xf32> to vector<4x8x1xf32>
    %51 = vector.broadcast %50 : vector<4x8x1xf32> to vector<4x8x8xf32>
    %52 = arith.subf %48, %51 : vector<4x8x8xf32>
    %53 = math.exp %52 : vector<4x8x8xf32>
    %cst_34 = arith.constant dense<0.000000e+00> : vector<4x8xf32>
    %54 = vector.multi_reduction <add>, %53, %cst_34 [2] : vector<4x8x8xf32> to vector<4x8xf32>
    %55 = vector.shape_cast %54 : vector<4x8xf32> to vector<4x8x1xf32>
    %56 = tpu.reciprocal %55 {approx = true} : vector<4x8x1xf32> -> vector<4x8x1xf32>
    %57 = vector.broadcast %56 : vector<4x8x1xf32> to vector<4x8x8xf32>
    %58 = arith.mulf %53, %57 : vector<4x8x8xf32>
    %59 = arith.truncf %58 : vector<4x8x8xf32> to vector<4x8x8xbf16>
    "tpu.trace_start"() <{level = 10 : i32, message = "hqk,hkd->hqd"}> : () -> ()
    %cst_35 = arith.constant dense<0.000000e+00> : vector<4x8x8xf32>
    %60 = tpu.matmul %59, %47, %cst_35 {dimension_numbers = #tpu.dot_dimension_numbers<[2], [1], [1], [2], [0, 0, 0, 1, 1, 2], [0], [0]>} : vector<4x8x8xbf16>, vector<4x8x8xbf16>, vector<4x8x8xf32> -> vector<4x8x8xf32>
    "tpu.trace_stop"() : () -> ()
    %61 = arith.truncf %60 : vector<4x8x8xf32> to vector<4x8x8xbf16>
    %c0_36 = arith.constant 0 : index
    %c0_37 = arith.constant 0 : index
    %c0_38 = arith.constant 0 : index
    %62 = vector.load %arg10[%c0_36, %c0_37, %c0_38] : memref<4x8x32xbf16, #tpu.memory_space<vmem>>, vector<4x8x32xbf16>
    "tpu.trace_start"() <{level = 10 : i32, message = "hsd,hde->hse"}> : () -> ()
    %cst_39 = arith.constant dense<0.000000e+00> : vector<4x8x32xf32>
    %63 = tpu.matmul %61, %62, %cst_39 {dimension_numbers = #tpu.dot_dimension_numbers<[2], [1], [1], [2], [0, 0, 0, 1, 1, 2], [0], [0]>} : vector<4x8x8xbf16>, vector<4x8x32xbf16>, vector<4x8x32xf32> -> vector<4x8x32xf32>
    "tpu.trace_stop"() : () -> ()
    %cst_40 = arith.constant dense<0.000000e+00> : vector<8x32xf32>
    %64 = vector.multi_reduction <add>, %63, %cst_40 [0] : vector<4x8x32xf32> to vector<8x32xf32>
    %c0_41 = arith.constant 0 : index
    %c0_42 = arith.constant 0 : index
    %65 = vector.load %arg11[%c0_41, %c0_42] : memref<1x32xf32, #tpu.memory_space<vmem>>, vector<1x32xf32>
    %66 = vector.broadcast %65 : vector<1x32xf32> to vector<8x32xf32>
    %67 = arith.addf %64, %66 : vector<8x32xf32>
    %68 = arith.addf %1, %67 : vector<8x32xf32>
    %c0_43 = arith.constant 0 : index
    %c0_44 = arith.constant 0 : index
    %69 = vector.load %arg12[%c0_43, %c0_44] : memref<1x32xf32, #tpu.memory_space<vmem>>, vector<1x32xf32>
    %c0_45 = arith.constant 0 : index
    %c0_46 = arith.constant 0 : index
    %70 = vector.load %arg13[%c0_45, %c0_46] : memref<1x32xf32, #tpu.memory_space<vmem>>, vector<1x32xf32>
    %cst_47 = arith.constant dense<0.000000e+00> : vector<8xf32>
    %71 = vector.multi_reduction <add>, %68, %cst_47 [1] : vector<8x32xf32> to vector<8xf32>
    %72 = vector.shape_cast %71 : vector<8xf32> to vector<8x1xf32>
    %cst_48 = arith.constant 3.200000e+01 : f32
    %73 = vector.broadcast %cst_48 : f32 to vector<8x1xf32>
    %74 = arith.divf %72, %73 : vector<8x1xf32>
    %75 = vector.broadcast %74 : vector<8x1xf32> to vector<8x32xf32>
    %76 = arith.subf %68, %75 : vector<8x32xf32>
    %77 = arith.mulf %76, %76 : vector<8x32xf32>
    %cst_49 = arith.constant dense<0.000000e+00> : vector<8xf32>
    %78 = vector.multi_reduction <add>, %77, %cst_49 [1] : vector<8x32xf32> to vector<8xf32>
    %79 = vector.shape_cast %78 : vector<8xf32> to vector<8x1xf32>
    %cst_50 = arith.constant 3.200000e+01 : f32
    %80 = vector.broadcast %cst_50 : f32 to vector<8x1xf32>
    %81 = arith.divf %79, %80 : vector<8x1xf32>
    %cst_51 = arith.constant 9.99999974E-6 : f32
    %82 = vector.broadcast %cst_51 : f32 to vector<8x1xf32>
    %83 = arith.addf %81, %82 : vector<8x1xf32>
    %84 = math.rsqrt %83 : vector<8x1xf32>
    %85 = vector.broadcast %84 : vector<8x1xf32> to vector<8x32xf32>
    %86 = arith.mulf %76, %85 : vector<8x32xf32>
    %87 = vector.broadcast %69 : vector<1x32xf32> to vector<8x32xf32>
    %88 = arith.mulf %86, %87 : vector<8x32xf32>
    %89 = vector.broadcast %70 : vector<1x32xf32> to vector<8x32xf32>
    %90 = arith.addf %88, %89 : vector<8x32xf32>
    %91 = arith.truncf %90 : vector<8x32xf32> to vector<8x32xbf16>
    %c0_52 = arith.constant 0 : index
    %c0_53 = arith.constant 0 : index
    %92 = vector.load %arg14[%c0_52, %c0_53] : memref<32x64xbf16, #tpu.memory_space<vmem>>, vector<32x64xbf16>
    %cst_54 = arith.constant dense<0.000000e+00> : vector<8x64xf32>
    %93 = tpu.matmul %91, %92, %cst_54 {dimension_numbers = #tpu.dot_dimension_numbers<[1], [0], [0], [1], [0, 0, 1, 1], [], []>} : vector<8x32xbf16>, vector<32x64xbf16>, vector<8x64xf32> -> vector<8x64xf32>
    %c0_55 = arith.constant 0 : index
    %c0_56 = arith.constant 0 : index
    %94 = vector.load %arg15[%c0_55, %c0_56] : memref<1x64xf32, #tpu.memory_space<vmem>>, vector<1x64xf32>
    %95 = vector.broadcast %94 : vector<1x64xf32> to vector<8x64xf32>
    %96 = arith.addf %93, %95 : vector<8x64xf32>
    %cst_57 = arith.constant 0.000000e+00 : f32
    %97 = vector.broadcast %cst_57 : f32 to vector<8x64xf32>
    %98 = arith.maximumf %96, %97 : vector<8x64xf32>
    %99 = arith.truncf %98 : vector<8x64xf32> to vector<8x64xbf16>
    %c0_58 = arith.constant 0 : index
    %c0_59 = arith.constant 0 : index
    %100 = vector.load %arg16[%c0_58, %c0_59] : memref<64x32xbf16, #tpu.memory_space<vmem>>, vector<64x32xbf16>
    %cst_60 = arith.constant dense<0.000000e+00> : vector<8x32xf32>
    %101 = tpu.matmul %99, %100, %cst_60 {dimension_numbers = #tpu.dot_dimension_numbers<[1], [0], [0], [1], [0, 0, 1, 1], [], []>} : vector<8x64xbf16>, vector<64x32xbf16>, vector<8x32xf32> -> vector<8x32xf32>
    %c0_61 = arith.constant 0 : index
    %c0_62 = arith.constant 0 : index
    %102 = vector.load %arg17[%c0_61, %c0_62] : memref<1x32xf32, #tpu.memory_space<vmem>>, vector<1x32xf32>
    %103 = vector.broadcast %102 : vector<1x32xf32> to vector<8x32xf32>
    %104 = arith.addf %101, %103 : vector<8x32xf32>
    %105 = arith.addf %68, %104 : vector<8x32xf32>
    %c0_63 = arith.constant 0 : index
    %c0_64 = arith.constant 0 : index
    %c0_65 = arith.constant 0 : index
    %106 = vector.load %arg18[%c0_63, %c0_64, %c0_65] : memref<1x8x32xf32, #tpu.memory_space<vmem>>, vector<1x8x32xf32>
    %107 = vector.shape_cast %106 : vector<1x8x32xf32> to vector<8x32xf32>
    %108 = vector.shape_cast %105 : vector<8x32xf32> to vector<1x8x32xf32>
    tpu.vector_store %arg18[%c0_63, %c0_64, %c0_65], %108 {strides = array<i32>} : memref<1x8x32xf32, #tpu.memory_space<vmem>>, vector<1x8x32xf32>,
    return
  }
  func.func @transform_0(%arg0: i32) -> (i32, i32, i32) {
    %c0_i32 = arith.constant 0 : i32
    %c0_i32_0 = arith.constant 0 : i32
    %c0_i32_1 = arith.constant 0 : i32
    return %arg0, %c0_i32, %c0_i32_0 : i32, i32, i32
  }
  func.func @transform_1(%arg0: i32) -> (i32, i32) {
    %c0_i32 = arith.constant 0 : i32
    %c0_i32_0 = arith.constant 0 : i32
    %c0_i32_1 = arith.constant 0 : i32
    return %c0_i32, %c0_i32_0 : i32, i32
  }
  func.func @transform_2(%arg0: i32) -> (i32, i32) {
    %c0_i32 = arith.constant 0 : i32
    %c0_i32_0 = arith.constant 0 : i32
    %c0_i32_1 = arith.constant 0 : i32
    return %c0_i32, %c0_i32_0 : i32, i32
  }
  func.func @transform_3(%arg0: i32) -> (i32, i32, i32) {
    %c0_i32 = arith.constant 0 : i32
    %c0_i32_0 = arith.constant 0 : i32
    %c0_i32_1 = arith.constant 0 : i32
    %c0_i32_2 = arith.constant 0 : i32
    return %c0_i32, %c0_i32_0, %c0_i32_1 : i32, i32, i32
  }
  func.func @transform_4(%arg0: i32) -> (i32, i32, i32) {
    %c0_i32 = arith.constant 0 : i32
    %c0_i32_0 = arith.constant 0 : i32
    %c0_i32_1 = arith.constant 0 : i32
    %c0_i32_2 = arith.constant 0 : i32
    return %c0_i32, %c0_i32_0, %c0_i32_1 : i32, i32, i32
  }
  func.func @transform_5(%arg0: i32) -> (i32, i32, i32) {
    %c0_i32 = arith.constant 0 : i32
    %c0_i32_0 = arith.constant 0 : i32
    %c0_i32_1 = arith.constant 0 : i32
    %c0_i32_2 = arith.constant 0 : i32
    return %c0_i32, %c0_i32_0, %c0_i32_1 : i32, i32, i32
  }
  func.func @transform_6(%arg0: i32) -> (i32, i32, i32) {
    %c0_i32 = arith.constant 0 : i32
    %c0_i32_0 = arith.constant 0 : i32
    %c0_i32_1 = arith.constant 0 : i32
    %c0_i32_2 = arith.constant 0 : i32
    return %c0_i32, %c0_i32_0, %c0_i32_1 : i32, i32, i32
  }
  func.func @transform_7(%arg0: i32) -> (i32, i32, i32) {
    %c0_i32 = arith.constant 0 : i32
    %c0_i32_0 = arith.constant 0 : i32
    %c0_i32_1 = arith.constant 0 : i32
    %c0_i32_2 = arith.constant 0 : i32
    return %c0_i32, %c0_i32_0, %c0_i32_1 : i32, i32, i32
  }
  func.func @transform_8(%arg0: i32) -> (i32, i32, i32) {
    %c0_i32 = arith.constant 0 : i32
    %c0_i32_0 = arith.constant 0 : i32
    %c0_i32_1 = arith.constant 0 : i32
    %c0_i32_2 = arith.constant 0 : i32
    return %c0_i32, %c0_i32_0, %c0_i32_1 : i32, i32, i32
  }
  func.func @transform_9(%arg0: i32) -> (i32, i32, i32) {
    %c0_i32 = arith.constant 0 : i32
    %c0_i32_0 = arith.constant 0 : i32
    %c0_i32_1 = arith.constant 0 : i32
    %c0_i32_2 = arith.constant 0 : i32
    return %c0_i32, %c0_i32_0, %c0_i32_1 : i32, i32, i32
  }
  func.func @transform_10(%arg0: i32) -> (i32, i32) {
    %c0_i32 = arith.constant 0 : i32
    %c0_i32_0 = arith.constant 0 : i32
    %c0_i32_1 = arith.constant 0 : i32
    return %c0_i32, %c0_i32_0 : i32, i32
  }
  func.func @transform_11(%arg0: i32) -> (i32, i32) {
    %c0_i32 = arith.constant 0 : i32
    %c0_i32_0 = arith.constant 0 : i32
    %c0_i32_1 = arith.constant 0 : i32
    return %c0_i32, %c0_i32_0 : i32, i32
  }
  func.func @transform_12(%arg0: i32) -> (i32, i32) {
    %c0_i32 = arith.constant 0 : i32
    %c0_i32_0 = arith.constant 0 : i32
    %c0_i32_1 = arith.constant 0 : i32
    return %c0_i32, %c0_i32_0 : i32, i32
  }
  func.func @transform_13(%arg0: i32) -> (i32, i32) {
    %c0_i32 = arith.constant 0 : i32
    %c0_i32_0 = arith.constant 0 : i32
    %c0_i32_1 = arith.constant 0 : i32
    return %c0_i32, %c0_i32_0 : i32, i32
  }
  func.func @transform_14(%arg0: i32) -> (i32, i32) {
    %c0_i32 = arith.constant 0 : i32
    %c0_i32_0 = arith.constant 0 : i32
    %c0_i32_1 = arith.constant 0 : i32
    return %c0_i32, %c0_i32_0 : i32, i32
  }
  func.func @transform_15(%arg0: i32) -> (i32, i32) {
    %c0_i32 = arith.constant 0 : i32
    %c0_i32_0 = arith.constant 0 : i32
    %c0_i32_1 = arith.constant 0 : i32
    return %c0_i32, %c0_i32_0 : i32, i32
  }
  func.func @transform_16(%arg0: i32) -> (i32, i32) {
    %c0_i32 = arith.constant 0 : i32
    %c0_i32_0 = arith.constant 0 : i32
    %c0_i32_1 = arith.constant 0 : i32
    return %c0_i32, %c0_i32_0 : i32, i32
  }
  func.func @transform_17(%arg0: i32) -> (i32, i32, i32) {
    %c0_i32 = arith.constant 0 : i32
    %c0_i32_0 = arith.constant 0 : i32
    %c0_i32_1 = arith.constant 0 : i32
    return %arg0, %c0_i32, %c0_i32_0 : i32, i32, i32
  }
}

</mosaic_0001>

<llo_original>
// kernel: tpu_custom_call.1
$region0: #{tpu_custom_call.1}
  #allocation0 [shape = 'u32[]', space=smem, size = 0x4, offset = 0x4, fixed_abs, tag = 'smem constant byte address 0x4 - core index']
  #allocation1 [shape = 'u32[144,128]{1,0:T(1,128)}', space=vmem, size = 0x12000, scoped, tag = 'internal scratch']
  %s0 = inlined_call_operand.vmem [shape: f32[2,8,32], index: 0, kind: input, shape index: {}]
  %s1 = inlined_call_operand.vmem [shape: f32[1,32], index: 1, kind: input, shape index: {}]
  %s2 = inlined_call_operand.vmem [shape: f32[1,32], index: 2, kind: input, shape index: {}]
  %s3 = inlined_call_operand.vmem [shape: bf16[4,32,8], index: 3, kind: input, shape index: {}]
  %s4 = inlined_call_operand.vmem [shape: f32[4,1,8], index: 4, kind: input, shape index: {}]
  %s5 = inlined_call_operand.vmem [shape: bf16[4,32,8], index: 5, kind: input, shape index: {}]
  %s6 = inlined_call_operand.vmem [shape: f32[4,1,8], index: 6, kind: input, shape index: {}]
  %s7 = inlined_call_operand.vmem [shape: bf16[4,32,8], index: 7, kind: input, shape index: {}]
  %s8 = inlined_call_operand.vmem [shape: f32[4,1,8], index: 8, kind: input, shape index: {}]
  %s9 = inlined_call_operand.vmem [shape: bf16[4,8,32], index: 9, kind: input, shape index: {}]
  %s10 = inlined_call_operand.vmem [shape: f32[1,32], index: 10, kind: input, shape index: {}]
  %s11 = inlined_call_operand.vmem [shape: f32[1,32], index: 11, kind: input, shape index: {}]
  %s12 = inlined_call_operand.vmem [shape: f32[1,32], index: 12, kind: input, shape index: {}]
  %s13 = inlined_call_operand.vmem [shape: bf16[32,64], index: 13, kind: input, shape index: {}]
  %s14 = inlined_call_operand.vmem [shape: f32[1,64], index: 14, kind: input, shape index: {}]
  %s15 = inlined_call_operand.vmem [shape: bf16[64,32], index: 15, kind: input, shape index: {}]
  %s16 = inlined_call_operand.vmem [shape: f32[1,32], index: 16, kind: input, shape index: {}]
  %s17 = inlined_call_operand.hbm [shape: f32[2,8,32], index: 17, kind: output, shape index: {}]
  %s18 = sld [smem:[#allocation0]]
  $region101: #{tpu_custom_call.1} parent=0
    _
  %s20 = ssub.s32 1, %s18
  %s21 = scalar_select 0, %s20, %s18
  $region1: #{tpu_custom_call.1} parent=0
    #allocation2 [shape = 'u8[8192]{0}', space=vmem, size = 0x2000, scoped, tag = 'output window, operand 0']
    #allocation3 [shape = 's32[2]{0}', space=sflag, size = 0x8, scoped, tag = 'scoped memory for tpu_custom_call.1']
    %22 = vsyncpa [#allocation3], 0
    %s23 = scalar_lea.sflag [#allocation3], 1
    %24 = vsyncpa %s23, 0
    loop: start=0, step=1, limit=4
    $region2: #{tpu_custom_call.1} parent=1 // loop_pre_header
      _
    $region3: #{tpu_custom_call.1} parent=1 // loop_header
      %s26 = sphi 0, %s30
      %p27 = scmp.ge.s32.totalorder %s26, 4
      %s36 = sphi 0, %s38
      %s39 = sphi 0, %s36
      %s40 = sphi 0, %s39
      %s56 = sphi 0, %s40
      %s60 = sphi 0, %s60
      %s62 = sphi 0, %s60
      %s63 = sphi 0, %s62
      %s77 = sphi 0, %s63
      %s81 = sphi 0, %s81
      %s83 = sphi 0, %s81
      %s84 = sphi 0, %s83
      %s98 = sphi 0, %s84
      %s102 = sphi 0, %s102
      %s104 = sphi 0, %s102
      %s105 = sphi 0, %s104
      %s119 = sphi 0, %s105
      %s123 = sphi 0, %s123
      %s125 = sphi 0, %s123
      %s126 = sphi 0, %s125
      %s140 = sphi 0, %s126
      %s144 = sphi 0, %s144
      %s146 = sphi 0, %s144
      %s147 = sphi 0, %s146
      %s161 = sphi 0, %s147
      %s165 = sphi 0, %s165
      %s167 = sphi 0, %s165
      %s168 = sphi 0, %s167
      %s182 = sphi 0, %s168
      %s186 = sphi 0, %s186
      %s188 = sphi 0, %s186
      %s189 = sphi 0, %s188
      %s203 = sphi 0, %s189
      %s207 = sphi 0, %s207
      %s209 = sphi 0, %s207
      %s210 = sphi 0, %s209
      %s224 = sphi 0, %s210
      %s228 = sphi 0, %s228
      %s230 = sphi 0, %s228
      %s231 = sphi 0, %s230
      %s245 = sphi 0, %s231
      %s249 = sphi 0, %s249
      %s251 = sphi 0, %s249
      %s252 = sphi 0, %s251
      %s266 = sphi 0, %s252
      %s270 = sphi 0, %s270
      %s272 = sphi 0, %s270
      %s273 = sphi 0, %s272
      %s287 = sphi 0, %s273
      %s291 = sphi 0, %s291
      %s293 = sphi 0, %s291
      %s294 = sphi 0, %s293
      %s308 = sphi 0, %s294
      %s312 = sphi 0, %s312
      %s314 = sphi 0, %s312
      %s315 = sphi 0, %s314
      %s329 = sphi 0, %s315
      %s333 = sphi 0, %s333
      %s335 = sphi 0, %s333
      %s336 = sphi 0, %s335
      %s350 = sphi 0, %s336
      %s354 = sphi 0, %s354
      %s356 = sphi 0, %s354
      %s357 = sphi 0, %s356
      %s371 = sphi 0, %s357
      %s375 = sphi 0, %s375
      %s377 = sphi 0, %s375
      %s378 = sphi 0, %s377
      %s392 = sphi 0, %s378
      %s398 = sphi 0, %s400
      %s401 = sphi 0, %s398
      %s402 = sphi 0, %s401
      %s418 = sphi 0, %s402
    $region4: #{tpu_custom_call.1} parent=1 // loop_header_branch
      %29 = sbr.rel (%p27) target = $region8
    $region5: #{tpu_custom_call.1} parent=1 // loop_body
      %s31 = ssub.s32 %s26, 1
      %s32 = ssub.s32 %s26, 2
      %s33 = sadd.s32 %s26, 1
      %s34 = ssub.s32 %s26, %s33
      %p35 = scmp.eq.s32.totalorder %s34, 0
      %s37 = sadd.s32 %s36, 1
      %s38 = scalar_select %p35, %s36, %s37
      %p41 = pneg %p35
      %p42 = scmp.eq.s32.totalorder %s26, 1
      %p43 = por %p41, %p42
      %p44 = scmp.ne.s32.totalorder %s36, %s39
      %p45 = scmp.eq.s32.totalorder %s26, 0
      %p46 = por %p44, %p45
      %p47 = scmp.ne.s32.totalorder %s36, %s39
      %p48 = scmp.eq.s32.totalorder %s31, 1
      %p49 = por %p47, %p48
      %p50 = scmp.ne.s32.totalorder %s39, %s40
      %p51 = scmp.eq.s32.totalorder %s31, 0
      %p52 = por %p50, %p51
      %p53 = scmp.ne.s32.totalorder %s39, %s40
      %p54 = scmp.eq.s32.totalorder %s32, 1
      %p55 = por %p53, %p54
      %p57 = scmp.ne.s32.totalorder %s40, %s56
      %p58 = scmp.eq.s32.totalorder %s32, 0
      %p59 = por %p57, %p58
      %s61 = sadd.s32 %s60, 1
      %p64 = scmp.eq.s32.totalorder %s26, 1
      %p65 = scmp.ne.s32.totalorder %s60, %s62
      %p66 = scmp.eq.s32.totalorder %s26, 0
      %p67 = por %p65, %p66
      %p68 = scmp.ne.s32.totalorder %s60, %s62
      %p69 = scmp.eq.s32.totalorder %s31, 1
      %p70 = por %p68, %p69
      %p71 = scmp.ne.s32.totalorder %s62, %s63
      %p72 = scmp.eq.s32.totalorder %s31, 0
      %p73 = por %p71, %p72
      %p74 = scmp.ne.s32.totalorder %s62, %s63
      %p75 = scmp.eq.s32.totalorder %s32, 1
      %p76 = por %p74, %p75
      %p78 = scmp.ne.s32.totalorder %s63, %s77
      %p79 = scmp.eq.s32.totalorder %s32, 0
      %p80 = por %p78, %p79
      %s82 = sadd.s32 %s81, 1
      %p85 = scmp.eq.s32.totalorder %s26, 1
      %p86 = scmp.ne.s32.totalorder %s81, %s83
      %p87 = scmp.eq.s32.totalorder %s26, 0
      %p88 = por %p86, %p87
      %p89 = scmp.ne.s32.totalorder %s81, %s83
      %p90 = scmp.eq.s32.totalorder %s31, 1
      %p91 = por %p89, %p90
      %p92 = scmp.ne.s32.totalorder %s83, %s84
      %p93 = scmp.eq.s32.totalorder %s31, 0
      %p94 = por %p92, %p93
      %p95 = scmp.ne.s32.totalorder %s83, %s84
      %p96 = scmp.eq.s32.totalorder %s32, 1
      %p97 = por %p95, %p96
      %p99 = scmp.ne.s32.totalorder %s84, %s98
      %p100 = scmp.eq.s32.totalorder %s32, 0
      %p101 = por %p99, %p100
      %s103 = sadd.s32 %s102, 1
      %p106 = scmp.eq.s32.totalorder %s26, 1
      %p107 = scmp.ne.s32.totalorder %s102, %s104
      %p108 = scmp.eq.s32.totalorder %s26, 0
      %p109 = por %p107, %p108
      %p110 = scmp.ne.s32.totalorder %s102, %s104
      %p111 = scmp.eq.s32.totalorder %s31, 1
      %p112 = por %p110, %p111
      %p113 = scmp.ne.s32.totalorder %s104, %s105
      %p114 = scmp.eq.s32.totalorder %s31, 0
      %p115 = por %p113, %p114
      %p116 = scmp.ne.s32.totalorder %s104, %s105
      %p117 = scmp.eq.s32.totalorder %s32, 1
      %p118 = por %p116, %p117
      %p120 = scmp.ne.s32.totalorder %s105, %s119
      %p121 = scmp.eq.s32.totalorder %s32, 0
      %p122 = por %p120, %p121
      %s124 = sadd.s32 %s123, 1
      %p127 = scmp.eq.s32.totalorder %s26, 1
      %p128 = scmp.ne.s32.totalorder %s123, %s125
      %p129 = scmp.eq.s32.totalorder %s26, 0
      %p130 = por %p128, %p129
      %p131 = scmp.ne.s32.totalorder %s123, %s125
      %p132 = scmp.eq.s32.totalorder %s31, 1
      %p133 = por %p131, %p132
      %p134 = scmp.ne.s32.totalorder %s125, %s126
      %p135 = scmp.eq.s32.totalorder %s31, 0
      %p136 = por %p134, %p135
      %p137 = scmp.ne.s32.totalorder %s125, %s126
      %p138 = scmp.eq.s32.totalorder %s32, 1
      %p139 = por %p137, %p138
      %p141 = scmp.ne.s32.totalorder %s126, %s140
      %p142 = scmp.eq.s32.totalorder %s32, 0
      %p143 = por %p141, %p142
      %s145 = sadd.s32 %s144, 1
      %p148 = scmp.eq.s32.totalorder %s26, 1
      %p149 = scmp.ne.s32.totalorder %s144, %s146
      %p150 = scmp.eq.s32.totalorder %s26, 0
      %p151 = por %p149, %p150
      %p152 = scmp.ne.s32.totalorder %s144, %s146
      %p153 = scmp.eq.s32.totalorder %s31, 1
      %p154 = por %p152, %p153
      %p155 = scmp.ne.s32.totalorder %s146, %s147
      %p156 = scmp.eq.s32.totalorder %s31, 0
      %p157 = por %p155, %p156
      %p158 = scmp.ne.s32.totalorder %s146, %s147
      %p159 = scmp.eq.s32.totalorder %s32, 1
      %p160 = por %p158, %p159
      %p162 = scmp.ne.s32.totalorder %s147, %s161
      %p163 = scmp.eq.s32.totalorder %s32, 0
      %p164 = por %p162, %p163
      %s166 = sadd.s32 %s165, 1
      %p169 = scmp.eq.s32.totalorder %s26, 1
      %p170 = scmp.ne.s32.totalorder %s165, %s167
      %p171 = scmp.eq.s32.totalorder %s26, 0
      %p172 = por %p170, %p171
      %p173 = scmp.ne.s32.totalorder %s165, %s167
      %p174 = scmp.eq.s32.totalorder %s31, 1
      %p175 = por %p173, %p174
      %p176 = scmp.ne.s32.totalorder %s167, %s168
      %p177 = scmp.eq.s32.totalorder %s31, 0
      %p178 = por %p176, %p177
      %p179 = scmp.ne.s32.totalorder %s167, %s168
      %p180 = scmp.eq.s32.totalorder %s32, 1
      %p181 = por %p179, %p180
      %p183 = scmp.ne.s32.totalorder %s168, %s182
      %p184 = scmp.eq.s32.totalorder %s32, 0
      %p185 = por %p183, %p184
      %s187 = sadd.s32 %s186, 1
      %p190 = scmp.eq.s32.totalorder %s26, 1
      %p191 = scmp.ne.s32.totalorder %s186, %s188
      %p192 = scmp.eq.s32.totalorder %s26, 0
      %p193 = por %p191, %p192
      %p194 = scmp.ne.s32.totalorder %s186, %s188
      %p195 = scmp.eq.s32.totalorder %s31, 1
      %p196 = por %p194, %p195
      %p197 = scmp.ne.s32.totalorder %s188, %s189
      %p198 = scmp.eq.s32.totalorder %s31, 0
      %p199 = por %p197, %p198
      %p200 = scmp.ne.s32.totalorder %s188, %s189
      %p201 = scmp.eq.s32.totalorder %s32, 1
      %p202 = por %p200, %p201
      %p204 = scmp.ne.s32.totalorder %s189, %s203
      %p205 = scmp.eq.s32.totalorder %s32, 0
      %p206 = por %p204, %p205
      %s208 = sadd.s32 %s207, 1
      %p211 = scmp.eq.s32.totalorder %s26, 1
      %p212 = scmp.ne.s32.totalorder %s207, %s209
      %p213 = scmp.eq.s32.totalorder %s26, 0
      %p214 = por %p212, %p213
      %p215 = scmp.ne.s32.totalorder %s207, %s209
      %p216 = scmp.eq.s32.totalorder %s31, 1
      %p217 = por %p215, %p216
      %p218 = scmp.ne.s32.totalorder %s209, %s210
      %p219 = scmp.eq.s32.totalorder %s31, 0
      %p220 = por %p218, %p219
      %p221 = scmp.ne.s32.totalorder %s209, %s210
      %p222 = scmp.eq.s32.totalorder %s32, 1
      %p223 = por %p221, %p222
      %p225 = scmp.ne.s32.totalorder %s210, %s224
      %p226 = scmp.eq.s32.totalorder %s32, 0
      %p227 = por %p225, %p226
      %s229 = sadd.s32 %s228, 1
      %p232 = scmp.eq.s32.totalorder %s26, 1
      %p233 = scmp.ne.s32.totalorder %s228, %s230
      %p234 = scmp.eq.s32.totalorder %s26, 0
      %p235 = por %p233, %p234
      %p236 = scmp.ne.s32.totalorder %s228, %s230
      %p237 = scmp.eq.s32.totalorder %s31, 1
      %p238 = por %p236, %p237
      %p239 = scmp.ne.s32.totalorder %s230, %s231
      %p240 = scmp.eq.s32.totalorder %s31, 0
      %p241 = por %p239, %p240
      %p242 = scmp.ne.s32.totalorder %s230, %s231
      %p243 = scmp.eq.s32.totalorder %s32, 1
      %p244 = por %p242, %p243
      %p246 = scmp.ne.s32.totalorder %s231, %s245
      %p247 = scmp.eq.s32.totalorder %s32, 0
      %p248 = por %p246, %p247
      %s250 = sadd.s32 %s249, 1
      %p253 = scmp.eq.s32.totalorder %s26, 1
      %p254 = scmp.ne.s32.totalorder %s249, %s251
      %p255 = scmp.eq.s32.totalorder %s26, 0
      %p256 = por %p254, %p255
      %p257 = scmp.ne.s32.totalorder %s249, %s251
      %p258 = scmp.eq.s32.totalorder %s31, 1
      %p259 = por %p257, %p258
      %p260 = scmp.ne.s32.totalorder %s251, %s252
      %p261 = scmp.eq.s32.totalorder %s31, 0
      %p262 = por %p260, %p261
      %p263 = scmp.ne.s32.totalorder %s251, %s252
      %p264 = scmp.eq.s32.totalorder %s32, 1
      %p265 = por %p263, %p264
      %p267 = scmp.ne.s32.totalorder %s252, %s266
      %p268 = scmp.eq.s32.totalorder %s32, 0
      %p269 = por %p267, %p268
      %s271 = sadd.s32 %s270, 1
      %p274 = scmp.eq.s32.totalorder %s26, 1
      %p275 = scmp.ne.s32.totalorder %s270, %s272
      %p276 = scmp.eq.s32.totalorder %s26, 0
      %p277 = por %p275, %p276
      %p278 = scmp.ne.s32.totalorder %s270, %s272
      %p279 = scmp.eq.s32.totalorder %s31, 1
      %p280 = por %p278, %p279
      %p281 = scmp.ne.s32.totalorder %s272, %s273
      %p282 = scmp.eq.s32.totalorder %s31, 0
      %p283 = por %p281, %p282
      %p284 = scmp.ne.s32.totalorder %s272, %s273
      %p285 = scmp.eq.s32.totalorder %s32, 1
      %p286 = por %p284, %p285
      %p288 = scmp.ne.s32.totalorder %s273, %s287
      %p289 = scmp.eq.s32.totalorder %s32, 0
      %p290 = por %p288, %p289
      %s292 = sadd.s32 %s291, 1
      %p295 = scmp.eq.s32.totalorder %s26, 1
      %p296 = scmp.ne.s32.totalorder %s291, %s293
      %p297 = scmp.eq.s32.totalorder %s26, 0
      %p298 = por %p296, %p297
      %p299 = scmp.ne.s32.totalorder %s291, %s293
      %p300 = scmp.eq.s32.totalorder %s31, 1
      %p301 = por %p299, %p300
      %p302 = scmp.ne.s32.totalorder %s293, %s294
      %p303 = scmp.eq.s32.totalorder %s31, 0
      %p304 = por %p302, %p303
      %p305 = scmp.ne.s32.totalorder %s293, %s294
      %p306 = scmp.eq.s32.totalorder %s32, 1
      %p307 = por %p305, %p306
      %p309 = scmp.ne.s32.totalorder %s294, %s308
      %p310 = scmp.eq.s32.totalorder %s32, 0
      %p311 = por %p309, %p310
      %s313 = sadd.s32 %s312, 1
      %p316 = scmp.eq.s32.totalorder %s26, 1
      %p317 = scmp.ne.s32.totalorder %s312, %s314
      %p318 = scmp.eq.s32.totalorder %s26, 0
      %p319 = por %p317, %p318
      %p320 = scmp.ne.s32.totalorder %s312, %s314
      %p321 = scmp.eq.s32.totalorder %s31, 1
      %p322 = por %p320, %p321
      %p323 = scmp.ne.s32.totalorder %s314, %s315
      %p324 = scmp.eq.s32.totalorder %s31, 0
      %p325 = por %p323, %p324
      %p326 = scmp.ne.s32.totalorder %s314, %s315
      %p327 = scmp.eq.s32.totalorder %s32, 1
      %p328 = por %p326, %p327
      %p330 = scmp.ne.s32.totalorder %s315, %s329
      %p331 = scmp.eq.s32.totalorder %s32, 0
      %p332 = por %p330, %p331
      %s334 = sadd.s32 %s333, 1
      %p337 = scmp.eq.s32.totalorder %s26, 1
      %p338 = scmp.ne.s32.totalorder %s333, %s335
      %p339 = scmp.eq.s32.totalorder %s26, 0
      %p340 = por %p338, %p339
      %p341 = scmp.ne.s32.totalorder %s333, %s335
      %p342 = scmp.eq.s32.totalorder %s31, 1
      %p343 = por %p341, %p342
      %p344 = scmp.ne.s32.totalorder %s335, %s336
      %p345 = scmp.eq.s32.totalorder %s31, 0
      %p346 = por %p344, %p345
      %p347 = scmp.ne.s32.totalorder %s335, %s336
      %p348 = scmp.eq.s32.totalorder %s32, 1
      %p349 = por %p347, %p348
      %p351 = scmp.ne.s32.totalorder %s336, %s350
      %p352 = scmp.eq.s32.totalorder %s32, 0
      %p353 = por %p351, %p352
      %s355 = sadd.s32 %s354, 1
      %p358 = scmp.eq.s32.totalorder %s26, 1
      %p359 = scmp.ne.s32.totalorder %s354, %s356
      %p360 = scmp.eq.s32.totalorder %s26, 0
      %p361 = por %p359, %p360
      %p362 = scmp.ne.s32.totalorder %s354, %s356
      %p363 = scmp.eq.s32.totalorder %s31, 1
      %p364 = por %p362, %p363
      %p365 = scmp.ne.s32.totalorder %s356, %s357
      %p366 = scmp.eq.s32.totalorder %s31, 0
      %p367 = por %p365, %p366
      %p368 = scmp.ne.s32.totalorder %s356, %s357
      %p369 = scmp.eq.s32.totalorder %s32, 1
      %p370 = por %p368, %p369
      %p372 = scmp.ne.s32.totalorder %s357, %s371
      %p373 = scmp.eq.s32.totalorder %s32, 0
      %p374 = por %p372, %p373
      %s376 = sadd.s32 %s375, 1
      %p379 = scmp.eq.s32.totalorder %s26, 1
      %p380 = scmp.ne.s32.totalorder %s375, %s377
      %p381 = scmp.eq.s32.totalorder %s26, 0
      %p382 = por %p380, %p381
      %p383 = scmp.ne.s32.totalorder %s375, %s377
      %p384 = scmp.eq.s32.totalorder %s31, 1
      %p385 = por %p383, %p384
      %p386 = scmp.ne.s32.totalorder %s377, %s378
      %p387 = scmp.eq.s32.totalorder %s31, 0
      %p388 = por %p386, %p387
      %p389 = scmp.ne.s32.totalorder %s377, %s378
      %p390 = scmp.eq.s32.totalorder %s32, 1
      %p391 = por %p389, %p390
      %p393 = scmp.ne.s32.totalorder %s378, %s392
      %p394 = scmp.eq.s32.totalorder %s32, 0
      %p395 = por %p393, %p394
      %s396 = ssub.s32 %s26, %s33
      %p397 = scmp.eq.s32.totalorder %s396, 0
      %s399 = sadd.s32 %s398, 1
      %s400 = scalar_select %p397, %s398, %s399
      %p403 = pneg %p397
      %p404 = scmp.eq.s32.totalorder %s26, 1
      %p405 = por %p403, %p404
      %p406 = scmp.ne.s32.totalorder %s398, %s401
      %p407 = scmp.eq.s32.totalorder %s26, 0
      %p408 = por %p406, %p407
      %p409 = scmp.ne.s32.totalorder %s398, %s401
      %p410 = scmp.eq.s32.totalorder %s31, 1
      %p411 = por %p409, %p410
      %p412 = scmp.ne.s32.totalorder %s401, %s402
      %p413 = scmp.eq.s32.totalorder %s31, 0
      %p414 = por %p412, %p413
      %p415 = scmp.ne.s32.totalorder %s401, %s402
      %p416 = scmp.eq.s32.totalorder %s32, 1
      %p417 = por %p415, %p416
      %p419 = scmp.ne.s32.totalorder %s402, %s418
      %p420 = scmp.eq.s32.totalorder %s32, 0
      %p421 = por %p419, %p420
      %p422 = scmp.le.s32.totalorder 1, %s26
      %p423 = scmp.lt.s32.totalorder %s26, 3
      %p424 = pnand %p422, %p423
      %p425 = pneg %p424
      // Predicated region
      $region9: #{tpu_custom_call.1} parent=5 // pred_check
        _
      $region10: #{tpu_custom_call.1} parent=5 // pred_check_branch
        %427 = sbr.rel (%p424) target = $region12
      $region11: #{tpu_custom_call.1} parent=5 // pred_region
        %s428 = ssub.s32 %s26, 1
        // Predicated region
        $region13: #{tpu_custom_call.1} parent=11 // pred_check
          %p429 = pneg %p73
        $region14: #{tpu_custom_call.1} parent=11 // pred_check_branch
          %431 = sbr.rel (%p429) target = $region16
        $region15: #{tpu_custom_call.1} parent=11 // pred_region
          _
        $region16: #{tpu_custom_call.1} parent=11 // pred_fallthru
          _
        // Predicated region
        $region17: #{tpu_custom_call.1} parent=11 // pred_check
          %p432 = pneg %p94
        $region18: #{tpu_custom_call.1} parent=11 // pred_check_branch
          %434 = sbr.rel (%p432) target = $region20
        $region19: #{tpu_custom_call.1} parent=11 // pred_region
          _
        $region20: #{tpu_custom_call.1} parent=11 // pred_fallthru
          _
        // Predicated region
        $region21: #{tpu_custom_call.1} parent=11 // pred_check
          %p435 = pneg %p115
        $region22: #{tpu_custom_call.1} parent=11 // pred_check_branch
          %437 = sbr.rel (%p435) target = $region24
        $region23: #{tpu_custom_call.1} parent=11 // pred_region
          _
        $region24: #{tpu_custom_call.1} parent=11 // pred_fallthru
          _
        // Predicated region
        $region25: #{tpu_custom_call.1} parent=11 // pred_check
          %p438 = pneg %p136
        $region26: #{tpu_custom_call.1} parent=11 // pred_check_branch
          %440 = sbr.rel (%p438) target = $region28
        $region27: #{tpu_custom_call.1} parent=11 // pred_region
          _
        $region28: #{tpu_custom_call.1} parent=11 // pred_fallthru
          _
        // Predicated region
        $region29: #{tpu_custom_call.1} parent=11 // pred_check
          %p441 = pneg %p157
        $region30: #{tpu_custom_call.1} parent=11 // pred_check_branch
          %443 = sbr.rel (%p441) target = $region32
        $region31: #{tpu_custom_call.1} parent=11 // pred_region
          _
        $region32: #{tpu_custom_call.1} parent=11 // pred_fallthru
          _
        // Predicated region
        $region33: #{tpu_custom_call.1} parent=11 // pred_check
          %p444 = pneg %p178
        $region34: #{tpu_custom_call.1} parent=11 // pred_check_branch
          %446 = sbr.rel (%p444) target = $region36
        $region35: #{tpu_custom_call.1} parent=11 // pred_region
          _
        $region36: #{tpu_custom_call.1} parent=11 // pred_fallthru
          _
        // Predicated region
        $region37: #{tpu_custom_call.1} parent=11 // pred_check
          %p447 = pneg %p199
        $region38: #{tpu_custom_call.1} parent=11 // pred_check_branch
          %449 = sbr.rel (%p447) target = $region40
        $region39: #{tpu_custom_call.1} parent=11 // pred_region
          _
        $region40: #{tpu_custom_call.1} parent=11 // pred_fallthru
          _
        // Predicated region
        $region41: #{tpu_custom_call.1} parent=11 // pred_check
          %p450 = pneg %p220
        $region42: #{tpu_custom_call.1} parent=11 // pred_check_branch
          %452 = sbr.rel (%p450) target = $region44
        $region43: #{tpu_custom_call.1} parent=11 // pred_region
          _
        $region44: #{tpu_custom_call.1} parent=11 // pred_fallthru
          _
        // Predicated region
        $region45: #{tpu_custom_call.1} parent=11 // pred_check
          %p453 = pneg %p241
        $region46: #{tpu_custom_call.1} parent=11 // pred_check_branch
          %455 = sbr.rel (%p453) target = $region48
        $region47: #{tpu_custom_call.1} parent=11 // pred_region
          _
        $region48: #{tpu_custom_call.1} parent=11 // pred_fallthru
          _
        // Predicated region
        $region49: #{tpu_custom_call.1} parent=11 // pred_check
          %p456 = pneg %p262
        $region50: #{tpu_custom_call.1} parent=11 // pred_check_branch
          %458 = sbr.rel (%p456) target = $region52
        $region51: #{tpu_custom_call.1} parent=11 // pred_region
          _
        $region52: #{tpu_custom_call.1} parent=11 // pred_fallthru
          _
        // Predicated region
        $region53: #{tpu_custom_call.1} parent=11 // pred_check
          %p459 = pneg %p283
        $region54: #{tpu_custom_call.1} parent=11 // pred_check_branch
          %461 = sbr.rel (%p459) target = $region56
        $region55: #{tpu_custom_call.1} parent=11 // pred_region
          _
        $region56: #{tpu_custom_call.1} parent=11 // pred_fallthru
          _
        // Predicated region
        $region57: #{tpu_custom_call.1} parent=11 // pred_check
          %p462 = pneg %p304
        $region58: #{tpu_custom_call.1} parent=11 // pred_check_branch
          %464 = sbr.rel (%p462) target = $region60
        $region59: #{tpu_custom_call.1} parent=11 // pred_region
          _
        $region60: #{tpu_custom_call.1} parent=11 // pred_fallthru
          _
        // Predicated region
        $region61: #{tpu_custom_call.1} parent=11 // pred_check
          %p465 = pneg %p325
        $region62: #{tpu_custom_call.1} parent=11 // pred_check_branch
          %467 = sbr.rel (%p465) target = $region64
        $region63: #{tpu_custom_call.1} parent=11 // pred_region
          _
        $region64: #{tpu_custom_call.1} parent=11 // pred_fallthru
          _
        // Predicated region
        $region65: #{tpu_custom_call.1} parent=11 // pred_check
          %p468 = pneg %p346
        $region66: #{tpu_custom_call.1} parent=11 // pred_check_branch
          %470 = sbr.rel (%p468) target = $region68
        $region67: #{tpu_custom_call.1} parent=11 // pred_region
          _
        $region68: #{tpu_custom_call.1} parent=11 // pred_fallthru
          _
        // Predicated region
        $region69: #{tpu_custom_call.1} parent=11 // pred_check
          %p471 = pneg %p367
        $region70: #{tpu_custom_call.1} parent=11 // pred_check_branch
          %473 = sbr.rel (%p471) target = $region72
        $region71: #{tpu_custom_call.1} parent=11 // pred_region
          _
        $region72: #{tpu_custom_call.1} parent=11 // pred_fallthru
          _
        // Predicated region
        $region73: #{tpu_custom_call.1} parent=11 // pred_check
          %p474 = pneg %p388
        $region74: #{tpu_custom_call.1} parent=11 // pred_check_branch
          %476 = sbr.rel (%p474) target = $region76
        $region75: #{tpu_custom_call.1} parent=11 // pred_region
          _
        $region76: #{tpu_custom_call.1} parent=11 // pred_fallthru
          _
      $region12: #{tpu_custom_call.1} parent=5 // pred_fallthru
        _
      %p477 = scmp.lt.s32.totalorder %s26, 2
      // Predicated region
      $region77: #{tpu_custom_call.1} parent=5 // pred_check
        %p478 = pneg %p477
      $region78: #{tpu_custom_call.1} parent=5 // pred_check_branch
        %480 = sbr.rel (%p478) target = $region80
      $region79: #{tpu_custom_call.1} parent=5 // pred_region
        // Predicated region
        $region81: #{tpu_custom_call.1} parent=79 // pred_check
          %p481 = pneg %p46
        $region82: #{tpu_custom_call.1} parent=79 // pred_check_branch
          %483 = sbr.rel (%p481) target = $region84
        $region83: #{tpu_custom_call.1} parent=79 // pred_region
          %p484 = scmp.lt.s32.totalorder %s26, 1
          %s485 = scalar_select %p484, %s26, 1
          %s486 = smul.addr %s485, 8
          %s487 = scalar_lea.vmem %s0, %s486
        $region84: #{tpu_custom_call.1} parent=79 // pred_fallthru
          _
      $region80: #{tpu_custom_call.1} parent=5 // pred_fallthru
        _
      %p488 = scmp.le.s32.totalorder 1, %s26
      %p489 = scmp.lt.s32.totalorder %s26, 3
      %p490 = pnand %p488, %p489
      %p491 = pneg %p490
      // Predicated region
      $region85: #{tpu_custom_call.1} parent=5 // pred_check
        _
      $region86: #{tpu_custom_call.1} parent=5 // pred_check_branch
        %493 = sbr.rel (%p490) target = $region88
      $region87: #{tpu_custom_call.1} parent=5 // pred_region
        %s494 = ssub.s32 %s26, 1
        %p495 = scmp.lt.s32.totalorder %s31, 1
        %s496 = scalar_select %p495, %s31, 1
        %s497 = smul.addr %s496, 8
        %s498 = scalar_lea.vmem %s0, %s497
        %p499 = pneg %p52
        %p500 = pneg %p49
        %p501 = pneg %p73
        %p502 = pneg %p70
        %p503 = pneg %p94
        %p504 = pneg %p91
        %p505 = pneg %p115
        %p506 = pneg %p112
        %p507 = pneg %p136
        %p508 = pneg %p133
        %p509 = pneg %p157
        %p510 = pneg %p154
        %p511 = pneg %p178
        %p512 = pneg %p175
        %p513 = pneg %p199
        %p514 = pneg %p196
        %p515 = pneg %p220
        %p516 = pneg %p217
        %p517 = pneg %p241
        %p518 = pneg %p238
        %p519 = pneg %p262
        %p520 = pneg %p259
        %p521 = pneg %p283
        %p522 = pneg %p280
        %p523 = pneg %p304
        %p524 = pneg %p301
        %p525 = pneg %p325
        %p526 = pneg %p322
        %p527 = pneg %p346
        %p528 = pneg %p343
        %p529 = pneg %p367
        %p530 = pneg %p364
        %p531 = pneg %p388
        %p532 = pneg %p385
        %p533 = pneg %p414
        %p534 = pneg %p411
        %s535 = sand.u32 %s401, 1
        %s536 = scalar_lea.sflag [#allocation3], %s535
        %s537 = sand.u32 %s401, 1
        %s538 = smul.addr %s537, 8
        %s539 = scalar_lea.vmem [#allocation2], %s538
        %p540 = scmp.lt.s32.totalorder %s31, 1
        %s541 = scalar_select %p540, %s31, 1
        %s542 = smul.addr %s541, 8
        %s543 = scalar_lea.vmem %s0, %s542
        %v545 = vld [vmem:[%s543] sm:$0xff]
        %v546 = vld [vmem:[%s1] sm:$0x1]
        %v547 = vld [vmem:[%s2] sm:$0x1]
        %vm548 = vcmask 261120
        %v549 = vsel %vm548, %v545, 0.0
        %550 = vadd.xlane.f32.xlu0 %v549
        %v551 = vpop.xlane.xlu0 %550
        %v552 = vrcp.pop 32.0
        %v553 = vmul.f32 %v551, %v552
        %v554 = vsub.f32 %v545, %v553
        %v555 = vmul.f32 %v554, %v554
        %v556 = vsel %vm548, %v555, 0.0
        %557 = vadd.xlane.f32.xlu0 %v556
        %v558 = vpop.xlane.xlu0 %557
        %v559 = vmul.f32 %v558, %v552
        %v560 = vadd.f32 %v559, 1e-05
        %v561 = vrsqrt.pop %v560
        %v562 = vmul.f32 %v554, %v561
        %v564 = vlaneseq
        %v565 = vshrl.u32 %v564, 7
        %v566 = vsub.s32 0, %v565
        %v567 = vrot.slane %v546, %v566
        %v569 = vmul.f32 %v562, %v567
        %v571 = vlaneseq
        %v572 = vshrl.u32 %v571, 7
        %v573 = vsub.s32 0, %v572
        %v574 = vrot.slane %v547, %v573
        %v576 = vadd.f32 %v569, %v574
        %v577 = vpack.c.bf16 %v576, %v576
        %v578 = vld [vmem:[%s3] sm:$0xf]
        %v579 = vld [vmem:[%s3 + $0x4] sm:$0xf]
        %v580 = vld [vmem:[%s3 + $0x8] sm:$0xf]
        %v581 = vld [vmem:[%s3 + $0xc] sm:$0xf]
        %v582 = vld [vmem:[%s3 + $0x10] sm:$0xf]
        %v583 = vld [vmem:[%s3 + $0x14] sm:$0xf]
        %v584 = vld [vmem:[%s3 + $0x18] sm:$0xf]
        %v585 = vld [vmem:[%s3 + $0x1c] sm:$0xf]
        %v586 = vld [vmem:[%s3 + $0x20] sm:$0xf]
        %v587 = vld [vmem:[%s3 + $0x24] sm:$0xf]
        %v588 = vld [vmem:[%s3 + $0x28] sm:$0xf]
        %v589 = vld [vmem:[%s3 + $0x2c] sm:$0xf]
        %v590 = vld [vmem:[%s3 + $0x30] sm:$0xf]
        %v591 = vld [vmem:[%s3 + $0x34] sm:$0xf]
        %v592 = vld [vmem:[%s3 + $0x38] sm:$0xf]
        %v593 = vld [vmem:[%s3 + $0x3c] sm:$0xf]
        %v594 = vld [vmem:[%s4] sm:$0x1]
        %v595 = vld [vmem:[%s4 + $0x1] sm:$0x1]
        %v596 = vld [vmem:[%s4 + $0x2] sm:$0x1]
        %v597 = vld [vmem:[%s4 + $0x3] sm:$0x1]
        %v602 = vlaneseq
        %v603 = vshrl.u32 %v602, 7
        %v604 = vsub.s32 0, %v603
        %v605 = vrot.slane %v594, %v604
        %v606 = vlaneseq
        %v607 = vshrl.u32 %v606, 7
        %v608 = vsub.s32 0, %v607
        %v609 = vrot.slane %v595, %v608
        %v610 = vlaneseq
        %v611 = vshrl.u32 %v610, 7
        %v612 = vsub.s32 0, %v611
        %v613 = vrot.slane %v596, %v612
        %v614 = vlaneseq
        %v615 = vshrl.u32 %v614, 7
        %v616 = vsub.s32 0, %v615
        %v617 = vrot.slane %v597, %v616
        %v626 = vunpack.c.l.b16 %v578
        %v627 = vunpack.c.l.b16 %v579
        %v628 = vunpack.c.l.b16 %v580
        %v629 = vunpack.c.l.b16 %v581
        %v630 = vpack.c.b16 %v627, %v626
        %v631 = vpack.c.b16 %v629, %v628
        %v635 = vsel %vm548, %v577, 0
        %637 = vmatprep.subr.bf16.mxu0 0
        %638 = vmatpush1.bf16.msra.mxu0 %v630
        %639 = vmatprep.subr.bf16.mxu0 0
        %640 = vmatpush1.bf16.msra.mxu0 %v631
        %641 = vmatprep.subr.bf16.mxu0 0
        %642 = vmatpush1.bf16.msra.mxu0 0
        %643 = vmatprep.subr.bf16.mxu0 0
        %644 = vmatpush1.bf16.msra.mxu0 0
        %645 = vmatprep.subr.bf16.mxu0 0
        %646 = vmatpush1.bf16.msra.mxu0 0
        %647 = vmatprep.subr.bf16.mxu0 0
        %648 = vmatpush1.bf16.msra.mxu0 0
        %649 = vmatprep.subr.bf16.mxu0 0
        %650 = vmatpush1.bf16.msra.mxu0 0
        %651 = vmatprep.subr.bf16.mxu0 0
        %652 = vmatpush1.bf16.msra.mxu0 0
        %653 = vmatprep.subr.bf16.mxu0 0
        %654 = vmatpush1.bf16.msra.mxu0 0
        %655 = vmatprep.subr.bf16.mxu0 0
        %656 = vmatpush1.bf16.msra.mxu0 0
        %657 = vmatprep.subr.bf16.mxu0 0
        %658 = vmatpush1.bf16.msra.mxu0 0
        %659 = vmatprep.subr.bf16.mxu0 0
        %660 = vmatpush1.bf16.msra.mxu0 0
        %661 = vmatprep.subr.bf16.mxu0 0
        %662 = vmatpush1.bf16.msra.mxu0 0
        %663 = vmatprep.subr.bf16.mxu0 0
        %664 = vmatpush1.bf16.msra.mxu0 0
        %665 = vmatprep.subr.bf16.mxu0 0
        %666 = vmatpush1.bf16.msra.mxu0 0
        %667 = vmatprep.subr.bf16.mxu0 0
        %668 = vmatpush1.bf16.msra.mxu0 0
        %669 = vmatprep.mubr.bf16.mxu0 0
        %670 = vmatmul.mubr.bf16.gmra.mrb[0].mxu0 %v635
        %v671 = vpop.f32.mrb[0].mxu0
        %v672 = vadd.f32 %v605, %v671
        %v673 = vpop.f32.mrb[0].mxu0
        %v674 = vpop.f32.mrb[0].mxu0
        %v675 = vpop.f32.mrb[0].mxu0
        %676 = vdwg.mxu0
        %v681 = vunpack.c.l.b16 %v582
        %v682 = vunpack.c.l.b16 %v583
        %v683 = vunpack.c.l.b16 %v584
        %v684 = vunpack.c.l.b16 %v585
        %v685 = vpack.c.b16 %v682, %v681
        %v686 = vpack.c.b16 %v684, %v683
        %689 = vmatprep.subr.bf16.mxu0 0
        %690 = vmatpush1.bf16.msra.mxu0 %v685
        %691 = vmatprep.subr.bf16.mxu0 0
        %692 = vmatpush1.bf16.msra.mxu0 %v686
        %693 = vmatprep.subr.bf16.mxu0 0
        %694 = vmatpush1.bf16.msra.mxu0 0
        %695 = vmatprep.subr.bf16.mxu0 0
        %696 = vmatpush1.bf16.msra.mxu0 0
        %697 = vmatprep.subr.bf16.mxu0 0
        %698 = vmatpush1.bf16.msra.mxu0 0
        %699 = vmatprep.subr.bf16.mxu0 0
        %700 = vmatpush1.bf16.msra.mxu0 0
        %701 = vmatprep.subr.bf16.mxu0 0
        %702 = vmatpush1.bf16.msra.mxu0 0
        %703 = vmatprep.subr.bf16.mxu0 0
        %704 = vmatpush1.bf16.msra.mxu0 0
        %705 = vmatprep.subr.bf16.mxu0 0
        %706 = vmatpush1.bf16.msra.mxu0 0
        %707 = vmatprep.subr.bf16.mxu0 0
        %708 = vmatpush1.bf16.msra.mxu0 0
        %709 = vmatprep.subr.bf16.mxu0 0
        %710 = vmatpush1.bf16.msra.mxu0 0
        %711 = vmatprep.subr.bf16.mxu0 0
        %712 = vmatpush1.bf16.msra.mxu0 0
        %713 = vmatprep.subr.bf16.mxu0 0
        %714 = vmatpush1.bf16.msra.mxu0 0
        %715 = vmatprep.subr.bf16.mxu0 0
        %716 = vmatpush1.bf16.msra.mxu0 0
        %717 = vmatprep.subr.bf16.mxu0 0
        %718 = vmatpush1.bf16.msra.mxu0 0
        %719 = vmatprep.subr.bf16.mxu0 0
        %720 = vmatpush1.bf16.msra.mxu0 0
        %721 = vmatprep.mubr.bf16.mxu0 0
        %722 = vmatmul.mubr.bf16.gmra.mrb[0].mxu0 %v635
        %v723 = vpop.f32.mrb[0].mxu0
        %v724 = vadd.f32 %v609, %v723
        %v725 = vpop.f32.mrb[0].mxu0
        %v726 = vpop.f32.mrb[0].mxu0
        %v727 = vpop.f32.mrb[0].mxu0
        %728 = vdwg.mxu0
        %v733 = vunpack.c.l.b16 %v586
        %v734 = vunpack.c.l.b16 %v587
        %v735 = vunpack.c.l.b16 %v588
        %v736 = vunpack.c.l.b16 %v589
        %v737 = vpack.c.b16 %v734, %v733
        %v738 = vpack.c.b16 %v736, %v735
        %741 = vmatprep.subr.bf16.mxu0 0
        %742 = vmatpush1.bf16.msra.mxu0 %v737
        %743 = vmatprep.subr.bf16.mxu0 0
        %744 = vmatpush1.bf16.msra.mxu0 %v738
        %745 = vmatprep.subr.bf16.mxu0 0
        %746 = vmatpush1.bf16.msra.mxu0 0
        %747 = vmatprep.subr.bf16.mxu0 0
        %748 = vmatpush1.bf16.msra.mxu0 0
        %749 = vmatprep.subr.bf16.mxu0 0
        %750 = vmatpush1.bf16.msra.mxu0 0
        %751 = vmatprep.subr.bf16.mxu0 0
        %752 = vmatpush1.bf16.msra.mxu0 0
        %753 = vmatprep.subr.bf16.mxu0 0
        %754 = vmatpush1.bf16.msra.mxu0 0
        %755 = vmatprep.subr.bf16.mxu0 0
        %756 = vmatpush1.bf16.msra.mxu0 0
        %757 = vmatprep.subr.bf16.mxu0 0
        %758 = vmatpush1.bf16.msra.mxu0 0
        %759 = vmatprep.subr.bf16.mxu0 0
        %760 = vmatpush1.bf16.msra.mxu0 0
        %761 = vmatprep.subr.bf16.mxu0 0
        %762 = vmatpush1.bf16.msra.mxu0 0
        %763 = vmatprep.subr.bf16.mxu0 0
        %764 = vmatpush1.bf16.msra.mxu0 0
        %765 = vmatprep.subr.bf16.mxu0 0
        %766 = vmatpush1.bf16.msra.mxu0 0
        %767 = vmatprep.subr.bf16.mxu0 0
        %768 = vmatpush1.bf16.msra.mxu0 0
        %769 = vmatprep.subr.bf16.mxu0 0
        %770 = vmatpush1.bf16.msra.mxu0 0
        %771 = vmatprep.subr.bf16.mxu0 0
        %772 = vmatpush1.bf16.msra.mxu0 0
        %773 = vmatprep.mubr.bf16.mxu0 0
        %774 = vmatmul.mubr.bf16.gmra.mrb[0].mxu0 %v635
        %v775 = vpop.f32.mrb[0].mxu0
        %v776 = vadd.f32 %v613, %v775
        %v777 = vpop.f32.mrb[0].mxu0
        %v778 = vpop.f32.mrb[0].mxu0
        %v779 = vpop.f32.mrb[0].mxu0
        %780 = vdwg.mxu0
        %v785 = vunpack.c.l.b16 %v590
        %v786 = vunpack.c.l.b16 %v591
        %v787 = vunpack.c.l.b16 %v592
        %v788 = vunpack.c.l.b16 %v593
        %v789 = vpack.c.b16 %v786, %v785
        %v790 = vpack.c.b16 %v788, %v787
        %793 = vmatprep.subr.bf16.mxu0 0
        %794 = vmatpush1.bf16.msra.mxu0 %v789
        %795 = vmatprep.subr.bf16.mxu0 0
        %796 = vmatpush1.bf16.msra.mxu0 %v790
        %797 = vmatprep.subr.bf16.mxu0 0
        %798 = vmatpush1.bf16.msra.mxu0 0
        %799 = vmatprep.subr.bf16.mxu0 0
        %800 = vmatpush1.bf16.msra.mxu0 0
        %801 = vmatprep.subr.bf16.mxu0 0
        %802 = vmatpush1.bf16.msra.mxu0 0
        %803 = vmatprep.subr.bf16.mxu0 0
        %804 = vmatpush1.bf16.msra.mxu0 0
        %805 = vmatprep.subr.bf16.mxu0 0
        %806 = vmatpush1.bf16.msra.mxu0 0
        %807 = vmatprep.subr.bf16.mxu0 0
        %808 = vmatpush1.bf16.msra.mxu0 0
        %809 = vmatprep.subr.bf16.mxu0 0
        %810 = vmatpush1.bf16.msra.mxu0 0
        %811 = vmatprep.subr.bf16.mxu0 0
        %812 = vmatpush1.bf16.msra.mxu0 0
        %813 = vmatprep.subr.bf16.mxu0 0
        %814 = vmatpush1.bf16.msra.mxu0 0
        %815 = vmatprep.subr.bf16.mxu0 0
        %816 = vmatpush1.bf16.msra.mxu0 0
        %817 = vmatprep.subr.bf16.mxu0 0
        %818 = vmatpush1.bf16.msra.mxu0 0
        %819 = vmatprep.subr.bf16.mxu0 0
        %820 = vmatpush1.bf16.msra.mxu0 0
        %821 = vmatprep.subr.bf16.mxu0 0
        %822 = vmatpush1.bf16.msra.mxu0 0
        %823 = vmatprep.subr.bf16.mxu0 0
        %824 = vmatpush1.bf16.msra.mxu0 0
        %825 = vmatprep.mubr.bf16.mxu0 0
        %826 = vmatmul.mubr.bf16.gmra.mrb[0].mxu0 %v635
        %v827 = vpop.f32.mrb[0].mxu0
        %v828 = vadd.f32 %v617, %v827
        %v829 = vpop.f32.mrb[0].mxu0
        %v830 = vpop.f32.mrb[0].mxu0
        %v831 = vpop.f32.mrb[0].mxu0
        %832 = vdwg.mxu0
        %v833 = vld [vmem:[%s5] sm:$0xf]
        %v834 = vld [vmem:[%s5 + $0x4] sm:$0xf]
        %v835 = vld [vmem:[%s5 + $0x8] sm:$0xf]
        %v836 = vld [vmem:[%s5 + $0xc] sm:$0xf]
        %v837 = vld [vmem:[%s5 + $0x10] sm:$0xf]
        %v838 = vld [vmem:[%s5 + $0x14] sm:$0xf]
        %v839 = vld [vmem:[%s5 + $0x18] sm:$0xf]
        %v840 = vld [vmem:[%s5 + $0x1c] sm:$0xf]
        %v841 = vld [vmem:[%s5 + $0x20] sm:$0xf]
        %v842 = vld [vmem:[%s5 + $0x24] sm:$0xf]
        %v843 = vld [vmem:[%s5 + $0x28] sm:$0xf]
        %v844 = vld [vmem:[%s5 + $0x2c] sm:$0xf]
        %v845 = vld [vmem:[%s5 + $0x30] sm:$0xf]
        %v846 = vld [vmem:[%s5 + $0x34] sm:$0xf]
        %v847 = vld [vmem:[%s5 + $0x38] sm:$0xf]
        %v848 = vld [vmem:[%s5 + $0x3c] sm:$0xf]
        %v849 = vld [vmem:[%s6] sm:$0x1]
        %v850 = vld [vmem:[%s6 + $0x1] sm:$0x1]
        %v851 = vld [vmem:[%s6 + $0x2] sm:$0x1]
        %v852 = vld [vmem:[%s6 + $0x3] sm:$0x1]
        %v857 = vlaneseq
        %v858 = vshrl.u32 %v857, 7
        %v859 = vsub.s32 0, %v858
        %v860 = vrot.slane %v849, %v859
        %v861 = vlaneseq
        %v862 = vshrl.u32 %v861, 7
        %v863 = vsub.s32 0, %v862
        %v864 = vrot.slane %v850, %v863
        %v865 = vlaneseq
        %v866 = vshrl.u32 %v865, 7
        %v867 = vsub.s32 0, %v866
        %v868 = vrot.slane %v851, %v867
        %v869 = vlaneseq
        %v870 = vshrl.u32 %v869, 7
        %v871 = vsub.s32 0, %v870
        %v872 = vrot.slane %v852, %v871
        %v881 = vunpack.c.l.b16 %v833
        %v882 = vunpack.c.l.b16 %v834
        %v883 = vunpack.c.l.b16 %v835
        %v884 = vunpack.c.l.b16 %v836
        %v885 = vpack.c.b16 %v882, %v881
        %v886 = vpack.c.b16 %v884, %v883
        %889 = vmatprep.subr.bf16.mxu0 0
        %890 = vmatpush1.bf16.msra.mxu0 %v885
        %891 = vmatprep.subr.bf16.mxu0 0
        %892 = vmatpush1.bf16.msra.mxu0 %v886
        %893 = vmatprep.subr.bf16.mxu0 0
        %894 = vmatpush1.bf16.msra.mxu0 0
        %895 = vmatprep.subr.bf16.mxu0 0
        %896 = vmatpush1.bf16.msra.mxu0 0
        %897 = vmatprep.subr.bf16.mxu0 0
        %898 = vmatpush1.bf16.msra.mxu0 0
        %899 = vmatprep.subr.bf16.mxu0 0
        %900 = vmatpush1.bf16.msra.mxu0 0
        %901 = vmatprep.subr.bf16.mxu0 0
        %902 = vmatpush1.bf16.msra.mxu0 0
        %903 = vmatprep.subr.bf16.mxu0 0
        %904 = vmatpush1.bf16.msra.mxu0 0
        %905 = vmatprep.subr.bf16.mxu0 0
        %906 = vmatpush1.bf16.msra.mxu0 0
        %907 = vmatprep.subr.bf16.mxu0 0
        %908 = vmatpush1.bf16.msra.mxu0 0
        %909 = vmatprep.subr.bf16.mxu0 0
        %910 = vmatpush1.bf16.msra.mxu0 0
        %911 = vmatprep.subr.bf16.mxu0 0
        %912 = vmatpush1.bf16.msra.mxu0 0
        %913 = vmatprep.subr.bf16.mxu0 0
        %914 = vmatpush1.bf16.msra.mxu0 0
        %915 = vmatprep.subr.bf16.mxu0 0
        %916 = vmatpush1.bf16.msra.mxu0 0
        %917 = vmatprep.subr.bf16.mxu0 0
        %918 = vmatpush1.bf16.msra.mxu0 0
        %919 = vmatprep.subr.bf16.mxu0 0
        %920 = vmatpush1.bf16.msra.mxu0 0
        %921 = vmatprep.mubr.bf16.mxu0 0
        %922 = vmatmul.mubr.bf16.gmra.mrb[0].mxu0 %v635
        %v923 = vpop.f32.mrb[0].mxu0
        %v924 = vadd.f32 %v860, %v923
        %v925 = vpop.f32.mrb[0].mxu0
        %v926 = vpop.f32.mrb[0].mxu0
        %v927 = vpop.f32.mrb[0].mxu0
        %928 = vdwg.mxu0
        %v933 = vunpack.c.l.b16 %v837
        %v934 = vunpack.c.l.b16 %v838
        %v935 = vunpack.c.l.b16 %v839
        %v936 = vunpack.c.l.b16 %v840
        %v937 = vpack.c.b16 %v934, %v933
        %v938 = vpack.c.b16 %v936, %v935
        %941 = vmatprep.subr.bf16.mxu0 0
        %942 = vmatpush1.bf16.msra.mxu0 %v937
        %943 = vmatprep.subr.bf16.mxu0 0
        %944 = vmatpush1.bf16.msra.mxu0 %v938
        %945 = vmatprep.subr.bf16.mxu0 0
        %946 = vmatpush1.bf16.msra.mxu0 0
        %947 = vmatprep.subr.bf16.mxu0 0
        %948 = vmatpush1.bf16.msra.mxu0 0
        %949 = vmatprep.subr.bf16.mxu0 0
        %950 = vmatpush1.bf16.msra.mxu0 0
        %951 = vmatprep.subr.bf16.mxu0 0
        %952 = vmatpush1.bf16.msra.mxu0 0
        %953 = vmatprep.subr.bf16.mxu0 0
        %954 = vmatpush1.bf16.msra.mxu0 0
        %955 = vmatprep.subr.bf16.mxu0 0
        %956 = vmatpush1.bf16.msra.mxu0 0
        %957 = vmatprep.subr.bf16.mxu0 0
        %958 = vmatpush1.bf16.msra.mxu0 0
        %959 = vmatprep.subr.bf16.mxu0 0
        %960 = vmatpush1.bf16.msra.mxu0 0
        %961 = vmatprep.subr.bf16.mxu0 0
        %962 = vmatpush1.bf16.msra.mxu0 0
        %963 = vmatprep.subr.bf16.mxu0 0
        %964 = vmatpush1.bf16.msra.mxu0 0
        %965 = vmatprep.subr.bf16.mxu0 0
        %966 = vmatpush1.bf16.msra.mxu0 0
        %967 = vmatprep.subr.bf16.mxu0 0
        %968 = vmatpush1.bf16.msra.mxu0 0
        %969 = vmatprep.subr.bf16.mxu0 0
        %970 = vmatpush1.bf16.msra.mxu0 0
        %971 = vmatprep.subr.bf16.mxu0 0
        %972 = vmatpush1.bf16.msra.mxu0 0
        %973 = vmatprep.mubr.bf16.mxu0 0
        %974 = vmatmul.mubr.bf16.gmra.mrb[0].mxu0 %v635
        %v975 = vpop.f32.mrb[0].mxu0
        %v976 = vadd.f32 %v864, %v975
        %v977 = vpop.f32.mrb[0].mxu0
        %v978 = vpop.f32.mrb[0].mxu0
        %v979 = vpop.f32.mrb[0].mxu0
        %980 = vdwg.mxu0
        %v985 = vunpack.c.l.b16 %v841
        %v986 = vunpack.c.l.b16 %v842
        %v987 = vunpack.c.l.b16 %v843
        %v988 = vunpack.c.l.b16 %v844
        %v989 = vpack.c.b16 %v986, %v985
        %v990 = vpack.c.b16 %v988, %v987
        %993 = vmatprep.subr.bf16.mxu0 0
        %994 = vmatpush1.bf16.msra.mxu0 %v989
        %995 = vmatprep.subr.bf16.mxu0 0
        %996 = vmatpush1.bf16.msra.mxu0 %v990
        %997 = vmatprep.subr.bf16.mxu0 0
        %998 = vmatpush1.bf16.msra.mxu0 0
        %999 = vmatprep.subr.bf16.mxu0 0
        %1000 = vmatpush1.bf16.msra.mxu0 0
        %1001 = vmatprep.subr.bf16.mxu0 0
        %1002 = vmatpush1.bf16.msra.mxu0 0
        %1003 = vmatprep.subr.bf16.mxu0 0
        %1004 = vmatpush1.bf16.msra.mxu0 0
        %1005 = vmatprep.subr.bf16.mxu0 0
        %1006 = vmatpush1.bf16.msra.mxu0 0
        %1007 = vmatprep.subr.bf16.mxu0 0
        %1008 = vmatpush1.bf16.msra.mxu0 0
        %1009 = vmatprep.subr.bf16.mxu0 0
        %1010 = vmatpush1.bf16.msra.mxu0 0
        %1011 = vmatprep.subr.bf16.mxu0 0
        %1012 = vmatpush1.bf16.msra.mxu0 0
        %1013 = vmatprep.subr.bf16.mxu0 0
        %1014 = vmatpush1.bf16.msra.mxu0 0
        %1015 = vmatprep.subr.bf16.mxu0 0
        %1016 = vmatpush1.bf16.msra.mxu0 0
        %1017 = vmatprep.subr.bf16.mxu0 0
        %1018 = vmatpush1.bf16.msra.mxu0 0
        %1019 = vmatprep.subr.bf16.mxu0 0
        %1020 = vmatpush1.bf16.msra.mxu0 0
        %1021 = vmatprep.subr.bf16.mxu0 0
        %1022 = vmatpush1.bf16.msra.mxu0 0
        %1023 = vmatprep.subr.bf16.mxu0 0
        %1024 = vmatpush1.bf16.msra.mxu0 0
        %1025 = vmatprep.mubr.bf16.mxu0 0
        %1026 = vmatmul.mubr.bf16.gmra.mrb[0].mxu0 %v635
        %v1027 = vpop.f32.mrb[0].mxu0
        %v1028 = vadd.f32 %v868, %v1027
        %v1029 = vpop.f32.mrb[0].mxu0
        %v1030 = vpop.f32.mrb[0].mxu0
        %v1031 = vpop.f32.mrb[0].mxu0
        %1032 = vdwg.mxu0
        %v1037 = vunpack.c.l.b16 %v845
        %v1038 = vunpack.c.l.b16 %v846
        %v1039 = vunpack.c.l.b16 %v847
        %v1040 = vunpack.c.l.b16 %v848
        %v1041 = vpack.c.b16 %v1038, %v1037
        %v1042 = vpack.c.b16 %v1040, %v1039
        %1045 = vmatprep.subr.bf16.mxu0 0
        %1046 = vmatpush1.bf16.msra.mxu0 %v1041
        %1047 = vmatprep.subr.bf16.mxu0 0
        %1048 = vmatpush1.bf16.msra.mxu0 %v1042
        %1049 = vmatprep.subr.bf16.mxu0 0
        %1050 = vmatpush1.bf16.msra.mxu0 0
        %1051 = vmatprep.subr.bf16.mxu0 0
        %1052 = vmatpush1.bf16.msra.mxu0 0
        %1053 = vmatprep.subr.bf16.mxu0 0
        %1054 = vmatpush1.bf16.msra.mxu0 0
        %1055 = vmatprep.subr.bf16.mxu0 0
        %1056 = vmatpush1.bf16.msra.mxu0 0
        %1057 = vmatprep.subr.bf16.mxu0 0
        %1058 = vmatpush1.bf16.msra.mxu0 0
        %1059 = vmatprep.subr.bf16.mxu0 0
        %1060 = vmatpush1.bf16.msra.mxu0 0
        %1061 = vmatprep.subr.bf16.mxu0 0
        %1062 = vmatpush1.bf16.msra.mxu0 0
        %1063 = vmatprep.subr.bf16.mxu0 0
        %1064 = vmatpush1.bf16.msra.mxu0 0
        %1065 = vmatprep.subr.bf16.mxu0 0
        %1066 = vmatpush1.bf16.msra.mxu0 0
        %1067 = vmatprep.subr.bf16.mxu0 0
        %1068 = vmatpush1.bf16.msra.mxu0 0
        %1069 = vmatprep.subr.bf16.mxu0 0
        %1070 = vmatpush1.bf16.msra.mxu0 0
        %1071 = vmatprep.subr.bf16.mxu0 0
        %1072 = vmatpush1.bf16.msra.mxu0 0
        %1073 = vmatprep.subr.bf16.mxu0 0
        %1074 = vmatpush1.bf16.msra.mxu0 0
        %1075 = vmatprep.subr.bf16.mxu0 0
        %1076 = vmatpush1.bf16.msra.mxu0 0
        %1077 = vmatprep.mubr.bf16.mxu0 0
        %1078 = vmatmul.mubr.bf16.gmra.mrb[0].mxu0 %v635
        %v1079 = vpop.f32.mrb[0].mxu0
        %v1080 = vadd.f32 %v872, %v1079
        %v1081 = vpop.f32.mrb[0].mxu0
        %v1082 = vpop.f32.mrb[0].mxu0
        %v1083 = vpop.f32.mrb[0].mxu0
        %1084 = vdwg.mxu0
        %v1085 = vld [vmem:[%s7] sm:$0xf]
        %v1086 = vld [vmem:[%s7 + $0x4] sm:$0xf]
        %v1087 = vld [vmem:[%s7 + $0x8] sm:$0xf]
        %v1088 = vld [vmem:[%s7 + $0xc] sm:$0xf]
        %v1089 = vld [vmem:[%s7 + $0x10] sm:$0xf]
        %v1090 = vld [vmem:[%s7 + $0x14] sm:$0xf]
        %v1091 = vld [vmem:[%s7 + $0x18] sm:$0xf]
        %v1092 = vld [vmem:[%s7 + $0x1c] sm:$0xf]
        %v1093 = vld [vmem:[%s7 + $0x20] sm:$0xf]
        %v1094 = vld [vmem:[%s7 + $0x24] sm:$0xf]
        %v1095 = vld [vmem:[%s7 + $0x28] sm:$0xf]
        %v1096 = vld [vmem:[%s7 + $0x2c] sm:$0xf]
        %v1097 = vld [vmem:[%s7 + $0x30] sm:$0xf]
        %v1098 = vld [vmem:[%s7 + $0x34] sm:$0xf]
        %v1099 = vld [vmem:[%s7 + $0x38] sm:$0xf]
        %v1100 = vld [vmem:[%s7 + $0x3c] sm:$0xf]
        %v1101 = vld [vmem:[%s8] sm:$0x1]
        %v1102 = vld [vmem:[%s8 + $0x1] sm:$0x1]
        %v1103 = vld [vmem:[%s8 + $0x2] sm:$0x1]
        %v1104 = vld [vmem:[%s8 + $0x3] sm:$0x1]
        %v1109 = vlaneseq
        %v1110 = vshrl.u32 %v1109, 7
        %v1111 = vsub.s32 0, %v1110
        %v1112 = vrot.slane %v1101, %v1111
        %v1113 = vlaneseq
        %v1114 = vshrl.u32 %v1113, 7
        %v1115 = vsub.s32 0, %v1114
        %v1116 = vrot.slane %v1102, %v1115
        %v1117 = vlaneseq
        %v1118 = vshrl.u32 %v1117, 7
        %v1119 = vsub.s32 0, %v1118
        %v1120 = vrot.slane %v1103, %v1119
        %v1121 = vlaneseq
        %v1122 = vshrl.u32 %v1121, 7
        %v1123 = vsub.s32 0, %v1122
        %v1124 = vrot.slane %v1104, %v1123
        %v1133 = vunpack.c.l.b16 %v1085
        %v1134 = vunpack.c.l.b16 %v1086
        %v1135 = vunpack.c.l.b16 %v1087
        %v1136 = vunpack.c.l.b16 %v1088
        %v1137 = vpack.c.b16 %v1134, %v1133
        %v1138 = vpack.c.b16 %v1136, %v1135
        %1141 = vmatprep.subr.bf16.mxu0 0
        %1142 = vmatpush1.bf16.msra.mxu0 %v1137
        %1143 = vmatprep.subr.bf16.mxu0 0
        %1144 = vmatpush1.bf16.msra.mxu0 %v1138
        %1145 = vmatprep.subr.bf16.mxu0 0
        %1146 = vmatpush1.bf16.msra.mxu0 0
        %1147 = vmatprep.subr.bf16.mxu0 0
        %1148 = vmatpush1.bf16.msra.mxu0 0
        %1149 = vmatprep.subr.bf16.mxu0 0
        %1150 = vmatpush1.bf16.msra.mxu0 0
        %1151 = vmatprep.subr.bf16.mxu0 0
        %1152 = vmatpush1.bf16.msra.mxu0 0
        %1153 = vmatprep.subr.bf16.mxu0 0
        %1154 = vmatpush1.bf16.msra.mxu0 0
        %1155 = vmatprep.subr.bf16.mxu0 0
        %1156 = vmatpush1.bf16.msra.mxu0 0
        %1157 = vmatprep.subr.bf16.mxu0 0
        %1158 = vmatpush1.bf16.msra.mxu0 0
        %1159 = vmatprep.subr.bf16.mxu0 0
        %1160 = vmatpush1.bf16.msra.mxu0 0
        %1161 = vmatprep.subr.bf16.mxu0 0
        %1162 = vmatpush1.bf16.msra.mxu0 0
        %1163 = vmatprep.subr.bf16.mxu0 0
        %1164 = vmatpush1.bf16.msra.mxu0 0
        %1165 = vmatprep.subr.bf16.mxu0 0
        %1166 = vmatpush1.bf16.msra.mxu0 0
        %1167 = vmatprep.subr.bf16.mxu0 0
        %1168 = vmatpush1.bf16.msra.mxu0 0
        %1169 = vmatprep.subr.bf16.mxu0 0
        %1170 = vmatpush1.bf16.msra.mxu0 0
        %1171 = vmatprep.subr.bf16.mxu0 0
        %1172 = vmatpush1.bf16.msra.mxu0 0
        %1173 = vmatprep.mubr.bf16.mxu0 0
        %1174 = vmatmul.mubr.bf16.gmra.mrb[0].mxu0 %v635
        %v1175 = vpop.f32.mrb[0].mxu0
        %v1176 = vadd.f32 %v1112, %v1175
        %v1177 = vpop.f32.mrb[0].mxu0
        %v1178 = vpop.f32.mrb[0].mxu0
        %v1179 = vpop.f32.mrb[0].mxu0
        %1180 = vdwg.mxu0
        %v1185 = vunpack.c.l.b16 %v1089
        %v1186 = vunpack.c.l.b16 %v1090
        %v1187 = vunpack.c.l.b16 %v1091
        %v1188 = vunpack.c.l.b16 %v1092
        %v1189 = vpack.c.b16 %v1186, %v1185
        %v1190 = vpack.c.b16 %v1188, %v1187
        %1193 = vmatprep.subr.bf16.mxu0 0
        %1194 = vmatpush1.bf16.msra.mxu0 %v1189
        %1195 = vmatprep.subr.bf16.mxu0 0
        %1196 = vmatpush1.bf16.msra.mxu0 %v1190
        %1197 = vmatprep.subr.bf16.mxu0 0
        %1198 = vmatpush1.bf16.msra.mxu0 0
        %1199 = vmatprep.subr.bf16.mxu0 0
        %1200 = vmatpush1.bf16.msra.mxu0 0
        %1201 = vmatprep.subr.bf16.mxu0 0
        %1202 = vmatpush1.bf16.msra.mxu0 0
        %1203 = vmatprep.subr.bf16.mxu0 0
        %1204 = vmatpush1.bf16.msra.mxu0 0
        %1205 = vmatprep.subr.bf16.mxu0 0
        %1206 = vmatpush1.bf16.msra.mxu0 0
        %1207 = vmatprep.subr.bf16.mxu0 0
        %1208 = vmatpush1.bf16.msra.mxu0 0
        %1209 = vmatprep.subr.bf16.mxu0 0
        %1210 = vmatpush1.bf16.msra.mxu0 0
        %1211 = vmatprep.subr.bf16.mxu0 0
        %1212 = vmatpush1.bf16.msra.mxu0 0
        %1213 = vmatprep.subr.bf16.mxu0 0
        %1214 = vmatpush1.bf16.msra.mxu0 0
        %1215 = vmatprep.subr.bf16.mxu0 0
        %1216 = vmatpush1.bf16.msra.mxu0 0
        %1217 = vmatprep.subr.bf16.mxu0 0
        %1218 = vmatpush1.bf16.msra.mxu0 0
        %1219 = vmatprep.subr.bf16.mxu0 0
        %1220 = vmatpush1.bf16.msra.mxu0 0
        %1221 = vmatprep.subr.bf16.mxu0 0
        %1222 = vmatpush1.bf16.msra.mxu0 0
        %1223 = vmatprep.subr.bf16.mxu0 0
        %1224 = vmatpush1.bf16.msra.mxu0 0
        %1225 = vmatprep.mubr.bf16.mxu0 0
        %1226 = vmatmul.mubr.bf16.gmra.mrb[0].mxu0 %v635
        %v1227 = vpop.f32.mrb[0].mxu0
        %v1228 = vadd.f32 %v1116, %v1227
        %v1229 = vpop.f32.mrb[0].mxu0
        %v1230 = vpop.f32.mrb[0].mxu0
        %v1231 = vpop.f32.mrb[0].mxu0
        %1232 = vdwg.mxu0
        %v1237 = vunpack.c.l.b16 %v1093
        %v1238 = vunpack.c.l.b16 %v1094
        %v1239 = vunpack.c.l.b16 %v1095
        %v1240 = vunpack.c.l.b16 %v1096
        %v1241 = vpack.c.b16 %v1238, %v1237
        %v1242 = vpack.c.b16 %v1240, %v1239
        %1245 = vmatprep.subr.bf16.mxu0 0
        %1246 = vmatpush1.bf16.msra.mxu0 %v1241
        %1247 = vmatprep.subr.bf16.mxu0 0
        %1248 = vmatpush1.bf16.msra.mxu0 %v1242
        %1249 = vmatprep.subr.bf16.mxu0 0
        %1250 = vmatpush1.bf16.msra.mxu0 0
        %1251 = vmatprep.subr.bf16.mxu0 0
        %1252 = vmatpush1.bf16.msra.mxu0 0
        %1253 = vmatprep.subr.bf16.mxu0 0
        %1254 = vmatpush1.bf16.msra.mxu0 0
        %1255 = vmatprep.subr.bf16.mxu0 0
        %1256 = vmatpush1.bf16.msra.mxu0 0
        %1257 = vmatprep.subr.bf16.mxu0 0
        %1258 = vmatpush1.bf16.msra.mxu0 0
        %1259 = vmatprep.subr.bf16.mxu0 0
        %1260 = vmatpush1.bf16.msra.mxu0 0
        %1261 = vmatprep.subr.bf16.mxu0 0
        %1262 = vmatpush1.bf16.msra.mxu0 0
        %1263 = vmatprep.subr.bf16.mxu0 0
        %1264 = vmatpush1.bf16.msra.mxu0 0
        %1265 = vmatprep.subr.bf16.mxu0 0
        %1266 = vmatpush1.bf16.msra.mxu0 0
        %1267 = vmatprep.subr.bf16.mxu0 0
        %1268 = vmatpush1.bf16.msra.mxu0 0
        %1269 = vmatprep.subr.bf16.mxu0 0
        %1270 = vmatpush1.bf16.msra.mxu0 0
        %1271 = vmatprep.subr.bf16.mxu0 0
        %1272 = vmatpush1.bf16.msra.mxu0 0
        %1273 = vmatprep.subr.bf16.mxu0 0
        %1274 = vmatpush1.bf16.msra.mxu0 0
        %1275 = vmatprep.subr.bf16.mxu0 0
        %1276 = vmatpush1.bf16.msra.mxu0 0
        %1277 = vmatprep.mubr.bf16.mxu0 0
        %1278 = vmatmul.mubr.bf16.gmra.mrb[0].mxu0 %v635
        %v1279 = vpop.f32.mrb[0].mxu0
        %v1280 = vadd.f32 %v1120, %v1279
        %v1281 = vpop.f32.mrb[0].mxu0
        %v1282 = vpop.f32.mrb[0].mxu0
        %v1283 = vpop.f32.mrb[0].mxu0
        %1284 = vdwg.mxu0
        %v1289 = vunpack.c.l.b16 %v1097
        %v1290 = vunpack.c.l.b16 %v1098
        %v1291 = vunpack.c.l.b16 %v1099
        %v1292 = vunpack.c.l.b16 %v1100
        %v1293 = vpack.c.b16 %v1290, %v1289
        %v1294 = vpack.c.b16 %v1292, %v1291
        %1297 = vmatprep.subr.bf16.mxu0 0
        %1298 = vmatpush1.bf16.msra.mxu0 %v1293
        %1299 = vmatprep.subr.bf16.mxu0 0
        %1300 = vmatpush1.bf16.msra.mxu0 %v1294
        %1301 = vmatprep.subr.bf16.mxu0 0
        %1302 = vmatpush1.bf16.msra.mxu0 0
        %1303 = vmatprep.subr.bf16.mxu0 0
        %1304 = vmatpush1.bf16.msra.mxu0 0
        %1305 = vmatprep.subr.bf16.mxu0 0
        %1306 = vmatpush1.bf16.msra.mxu0 0
        %1307 = vmatprep.subr.bf16.mxu0 0
        %1308 = vmatpush1.bf16.msra.mxu0 0
        %1309 = vmatprep.subr.bf16.mxu0 0
        %1310 = vmatpush1.bf16.msra.mxu0 0
        %1311 = vmatprep.subr.bf16.mxu0 0
        %1312 = vmatpush1.bf16.msra.mxu0 0
        %1313 = vmatprep.subr.bf16.mxu0 0
        %1314 = vmatpush1.bf16.msra.mxu0 0
        %1315 = vmatprep.subr.bf16.mxu0 0
        %1316 = vmatpush1.bf16.msra.mxu0 0
        %1317 = vmatprep.subr.bf16.mxu0 0
        %1318 = vmatpush1.bf16.msra.mxu0 0
        %1319 = vmatprep.subr.bf16.mxu0 0
        %1320 = vmatpush1.bf16.msra.mxu0 0
        %1321 = vmatprep.subr.bf16.mxu0 0
        %1322 = vmatpush1.bf16.msra.mxu0 0
        %1323 = vmatprep.subr.bf16.mxu0 0
        %1324 = vmatpush1.bf16.msra.mxu0 0
        %1325 = vmatprep.subr.bf16.mxu0 0
        %1326 = vmatpush1.bf16.msra.mxu0 0
        %1327 = vmatprep.subr.bf16.mxu0 0
        %1328 = vmatpush1.bf16.msra.mxu0 0
        %1329 = vmatprep.mubr.bf16.mxu0 0
        %1330 = vmatmul.mubr.bf16.gmra.mrb[0].mxu0 %v635
        %v1331 = vpop.f32.mrb[0].mxu0
        %v1332 = vadd.f32 %v1124, %v1331
        %v1333 = vpop.f32.mrb[0].mxu0
        %v1334 = vpop.f32.mrb[0].mxu0
        %v1335 = vpop.f32.mrb[0].mxu0
        %1336 = vdwg.mxu0
        %v1337 = vmul.f32 %v672, 0.35355338
        %v1338 = vmul.f32 %v724, 0.35355338
        %v1339 = vmul.f32 %v776, 0.35355338
        %v1340 = vmul.f32 %v828, 0.35355338
        %v1341 = vpack.c.bf16 %v1337, %v1337
        %v1342 = vpack.c.bf16 %v1338, %v1338
        %v1343 = vpack.c.bf16 %v1339, %v1339
        %v1344 = vpack.c.bf16 %v1340, %v1340
        %v1345 = vpack.c.bf16 %v924, %v924
        %v1346 = vpack.c.bf16 %v976, %v976
        %v1347 = vpack.c.bf16 %v1028, %v1028
        %v1348 = vpack.c.bf16 %v1080, %v1080
        %v1349 = vpack.c.bf16 %v1176, %v1176
        %v1350 = vpack.c.bf16 %v1228, %v1228
        %v1351 = vpack.c.bf16 %v1280, %v1280
        %v1352 = vpack.c.bf16 %v1332, %v1332
        %vm1353 = vcmask 64512
        %v1355 = vsel %vm1353, %v1341, 0
        %v1358 = vsel %vm1353, %v1345, 0
        %1360 = vmatprep.subr.bf16.mxu0 0
        %1361 = vmatpush1.bf16.xpose.msra.mxu0 %v1358
        %1362 = vmatprep.subr.bf16.mxu0 0
        %1363 = vmatpush1.bf16.xpose.msra.mxu0 0
        %1364 = vmatprep.subr.bf16.mxu0 0
        %1365 = vmatpush1.bf16.xpose.msra.mxu0 0
        %1366 = vmatprep.subr.bf16.mxu0 0
        %1367 = vmatpush1.bf16.xpose.msra.mxu0 0
        %1368 = vmatprep.subr.bf16.mxu0 0
        %1369 = vmatpush1.bf16.xpose.msra.mxu0 0
        %1370 = vmatprep.subr.bf16.mxu0 0
        %1371 = vmatpush1.bf16.xpose.msra.mxu0 0
        %1372 = vmatprep.subr.bf16.mxu0 0
        %1373 = vmatpush1.bf16.xpose.msra.mxu0 0
        %1374 = vmatprep.subr.bf16.mxu0 0
        %1375 = vmatpush1.bf16.xpose.msra.mxu0 0
        %1376 = vmatprep.subr.bf16.mxu0 0
        %1377 = vmatpush1.bf16.xpose.msra.mxu0 0
        %1378 = vmatprep.subr.bf16.mxu0 0
        %1379 = vmatpush1.bf16.xpose.msra.mxu0 0
        %1380 = vmatprep.subr.bf16.mxu0 0
        %1381 = vmatpush1.bf16.xpose.msra.mxu0 0
        %1382 = vmatprep.subr.bf16.mxu0 0
        %1383 = vmatpush1.bf16.xpose.msra.mxu0 0
        %1384 = vmatprep.subr.bf16.mxu0 0
        %1385 = vmatpush1.bf16.xpose.msra.mxu0 0
        %1386 = vmatprep.subr.bf16.mxu0 0
        %1387 = vmatpush1.bf16.xpose.msra.mxu0 0
        %1388 = vmatprep.subr.bf16.mxu0 0
        %1389 = vmatpush1.bf16.xpose.msra.mxu0 0
        %1390 = vmatprep.subr.bf16.mxu0 0
        %1391 = vmatpush1.bf16.xpose.msra.mxu0 0
        %1392 = vmatprep.mubr.bf16.mxu0 0
        %1393 = vmatmul.mubr.bf16.gmra.mrb[0].mxu0 %v1355
        %v1394 = vpop.f32.mrb[0].mxu0
        %v1395 = vadd.f32 0.0, %v1394
        %v1396 = vpop.f32.mrb[0].mxu0
        %v1397 = vpop.f32.mrb[0].mxu0
        %v1398 = vpop.f32.mrb[0].mxu0
        %1399 = vdwg.mxu0
        %v1401 = vsel %vm1353, %v1342, 0
        %v1404 = vsel %vm1353, %v1346, 0
        %1406 = vmatprep.subr.bf16.mxu0 0
        %1407 = vmatpush1.bf16.xpose.msra.mxu0 %v1404
        %1408 = vmatprep.subr.bf16.mxu0 0
        %1409 = vmatpush1.bf16.xpose.msra.mxu0 0
        %1410 = vmatprep.subr.bf16.mxu0 0
        %1411 = vmatpush1.bf16.xpose.msra.mxu0 0
        %1412 = vmatprep.subr.bf16.mxu0 0
        %1413 = vmatpush1.bf16.xpose.msra.mxu0 0
        %1414 = vmatprep.subr.bf16.mxu0 0
        %1415 = vmatpush1.bf16.xpose.msra.mxu0 0
        %1416 = vmatprep.subr.bf16.mxu0 0
        %1417 = vmatpush1.bf16.xpose.msra.mxu0 0
        %1418 = vmatprep.subr.bf16.mxu0 0
        %1419 = vmatpush1.bf16.xpose.msra.mxu0 0
        %1420 = vmatprep.subr.bf16.mxu0 0
        %1421 = vmatpush1.bf16.xpose.msra.mxu0 0
        %1422 = vmatprep.subr.bf16.mxu0 0
        %1423 = vmatpush1.bf16.xpose.msra.mxu0 0
        %1424 = vmatprep.subr.bf16.mxu0 0
        %1425 = vmatpush1.bf16.xpose.msra.mxu0 0
        %1426 = vmatprep.subr.bf16.mxu0 0
        %1427 = vmatpush1.bf16.xpose.msra.mxu0 0
        %1428 = vmatprep.subr.bf16.mxu0 0
        %1429 = vmatpush1.bf16.xpose.msra.mxu0 0
        %1430 = vmatprep.subr.bf16.mxu0 0
        %1431 = vmatpush1.bf16.xpose.msra.mxu0 0
        %1432 = vmatprep.subr.bf16.mxu0 0
        %1433 = vmatpush1.bf16.xpose.msra.mxu0 0
        %1434 = vmatprep.subr.bf16.mxu0 0
        %1435 = vmatpush1.bf16.xpose.msra.mxu0 0
        %1436 = vmatprep.subr.bf16.mxu0 0
        %1437 = vmatpush1.bf16.xpose.msra.mxu0 0
        %1438 = vmatprep.mubr.bf16.mxu0 0
        %1439 = vmatmul.mubr.bf16.gmra.mrb[0].mxu0 %v1401
        %v1440 = vpop.f32.mrb[0].mxu0
        %v1441 = vadd.f32 0.0, %v1440
        %v1442 = vpop.f32.mrb[0].mxu0
        %v1443 = vpop.f32.mrb[0].mxu0
        %v1444 = vpop.f32.mrb[0].mxu0
        %1445 = vdwg.mxu0
        %v1447 = vsel %vm1353, %v1343, 0
        %v1450 = vsel %vm1353, %v1347, 0
        %1452 = vmatprep.subr.bf16.mxu0 0
        %1453 = vmatpush1.bf16.xpose.msra.mxu0 %v1450
        %1454 = vmatprep.subr.bf16.mxu0 0
        %1455 = vmatpush1.bf16.xpose.msra.mxu0 0
        %1456 = vmatprep.subr.bf16.mxu0 0
        %1457 = vmatpush1.bf16.xpose.msra.mxu0 0
        %1458 = vmatprep.subr.bf16.mxu0 0
        %1459 = vmatpush1.bf16.xpose.msra.mxu0 0
        %1460 = vmatprep.subr.bf16.mxu0 0
        %1461 = vmatpush1.bf16.xpose.msra.mxu0 0
        %1462 = vmatprep.subr.bf16.mxu0 0
        %1463 = vmatpush1.bf16.xpose.msra.mxu0 0
        %1464 = vmatprep.subr.bf16.mxu0 0
        %1465 = vmatpush1.bf16.xpose.msra.mxu0 0
        %1466 = vmatprep.subr.bf16.mxu0 0
        %1467 = vmatpush1.bf16.xpose.msra.mxu0 0
        %1468 = vmatprep.subr.bf16.mxu0 0
        %1469 = vmatpush1.bf16.xpose.msra.mxu0 0
        %1470 = vmatprep.subr.bf16.mxu0 0
        %1471 = vmatpush1.bf16.xpose.msra.mxu0 0
        %1472 = vmatprep.subr.bf16.mxu0 0
        %1473 = vmatpush1.bf16.xpose.msra.mxu0 0
        %1474 = vmatprep.subr.bf16.mxu0 0
        %1475 = vmatpush1.bf16.xpose.msra.mxu0 0
        %1476 = vmatprep.subr.bf16.mxu0 0
        %1477 = vmatpush1.bf16.xpose.msra.mxu0 0
        %1478 = vmatprep.subr.bf16.mxu0 0
        %1479 = vmatpush1.bf16.xpose.msra.mxu0 0
        %1480 = vmatprep.subr.bf16.mxu0 0
        %1481 = vmatpush1.bf16.xpose.msra.mxu0 0
        %1482 = vmatprep.subr.bf16.mxu0 0
        %1483 = vmatpush1.bf16.xpose.msra.mxu0 0
        %1484 = vmatprep.mubr.bf16.mxu0 0
        %1485 = vmatmul.mubr.bf16.gmra.mrb[0].mxu0 %v1447
        %v1486 = vpop.f32.mrb[0].mxu0
        %v1487 = vadd.f32 0.0, %v1486
        %v1488 = vpop.f32.mrb[0].mxu0
        %v1489 = vpop.f32.mrb[0].mxu0
        %v1490 = vpop.f32.mrb[0].mxu0
        %1491 = vdwg.mxu0
        %v1493 = vsel %vm1353, %v1344, 0
        %v1496 = vsel %vm1353, %v1348, 0
        %1498 = vmatprep.subr.bf16.mxu0 0
        %1499 = vmatpush1.bf16.xpose.msra.mxu0 %v1496
        %1500 = vmatprep.subr.bf16.mxu0 0
        %1501 = vmatpush1.bf16.xpose.msra.mxu0 0
        %1502 = vmatprep.subr.bf16.mxu0 0
        %1503 = vmatpush1.bf16.xpose.msra.mxu0 0
        %1504 = vmatprep.subr.bf16.mxu0 0
        %1505 = vmatpush1.bf16.xpose.msra.mxu0 0
        %1506 = vmatprep.subr.bf16.mxu0 0
        %1507 = vmatpush1.bf16.xpose.msra.mxu0 0
        %1508 = vmatprep.subr.bf16.mxu0 0
        %1509 = vmatpush1.bf16.xpose.msra.mxu0 0
        %1510 = vmatprep.subr.bf16.mxu0 0
        %1511 = vmatpush1.bf16.xpose.msra.mxu0 0
        %1512 = vmatprep.subr.bf16.mxu0 0
        %1513 = vmatpush1.bf16.xpose.msra.mxu0 0
        %1514 = vmatprep.subr.bf16.mxu0 0
        %1515 = vmatpush1.bf16.xpose.msra.mxu0 0
        %1516 = vmatprep.subr.bf16.mxu0 0
        %1517 = vmatpush1.bf16.xpose.msra.mxu0 0
        %1518 = vmatprep.subr.bf16.mxu0 0
        %1519 = vmatpush1.bf16.xpose.msra.mxu0 0
        %1520 = vmatprep.subr.bf16.mxu0 0
        %1521 = vmatpush1.bf16.xpose.msra.mxu0 0
        %1522 = vmatprep.subr.bf16.mxu0 0
        %1523 = vmatpush1.bf16.xpose.msra.mxu0 0
        %1524 = vmatprep.subr.bf16.mxu0 0
        %1525 = vmatpush1.bf16.xpose.msra.mxu0 0
        %1526 = vmatprep.subr.bf16.mxu0 0
        %1527 = vmatpush1.bf16.xpose.msra.mxu0 0
        %1528 = vmatprep.subr.bf16.mxu0 0
        %1529 = vmatpush1.bf16.xpose.msra.mxu0 0
        %1530 = vmatprep.mubr.bf16.mxu0 0
        %1531 = vmatmul.mubr.bf16.gmra.mrb[0].mxu0 %v1493
        %v1532 = vpop.f32.mrb[0].mxu0
        %v1533 = vadd.f32 0.0, %v1532
        %v1534 = vpop.f32.mrb[0].mxu0
        %v1535 = vpop.f32.mrb[0].mxu0
        %v1536 = vpop.f32.mrb[0].mxu0
        %1537 = vdwg.mxu0
        %v1538 = vsel %vm1353, %v1395, -inf
        %1539 = vmax.xlane.f32.xlu0 %v1538
        %v1540 = vpop.xlane.xlu0 %1539
        %v1541 = vsel %vm1353, %v1441, -inf
        %1542 = vmax.xlane.f32.xlu0 %v1541
        %v1543 = vpop.xlane.xlu0 %1542
        %v1544 = vsel %vm1353, %v1487, -inf
        %1545 = vmax.xlane.f32.xlu0 %v1544
        %v1546 = vpop.xlane.xlu0 %1545
        %v1547 = vsel %vm1353, %v1533, -inf
        %1548 = vmax.xlane.f32.xlu0 %v1547
        %v1549 = vpop.xlane.xlu0 %1548
        %v1550 = vsub.f32 %v1395, %v1540
        %v1551 = vsub.f32 %v1441, %v1543
        %v1552 = vsub.f32 %v1487, %v1546
        %v1553 = vsub.f32 %v1533, %v1549
        %v1554 = vmul.f32 %v1550, 1.442695
        %v1555 = vpow.pop %v1554
        %v1556 = vmul.f32 %v1551, 1.442695
        %v1557 = vpow.pop %v1556
        %v1558 = vmul.f32 %v1552, 1.442695
        %v1559 = vpow.pop %v1558
        %v1560 = vmul.f32 %v1553, 1.442695
        %v1561 = vpow.pop %v1560
        %v1562 = vsel %vm1353, %v1555, 0.0
        %1563 = vadd.xlane.f32.xlu0 %v1562
        %v1564 = vpop.xlane.xlu0 %1563
        %v1565 = vsel %vm1353, %v1557, 0.0
        %1566 = vadd.xlane.f32.xlu0 %v1565
        %v1567 = vpop.xlane.xlu0 %1566
        %v1568 = vsel %vm1353, %v1559, 0.0
        %1569 = vadd.xlane.f32.xlu0 %v1568
        %v1570 = vpop.xlane.xlu0 %1569
        %v1571 = vsel %vm1353, %v1561, 0.0
        %1572 = vadd.xlane.f32.xlu0 %v1571
        %v1573 = vpop.xlane.xlu0 %1572
        %v1574 = vrcp.pop %v1564
        %v1575 = vrcp.pop %v1567
        %v1576 = vrcp.pop %v1570
        %v1577 = vrcp.pop %v1573
        %v1578 = vmul.f32 %v1555, %v1574
        %v1579 = vmul.f32 %v1557, %v1575
        %v1580 = vmul.f32 %v1559, %v1576
        %v1581 = vmul.f32 %v1561, %v1577
        %v1582 = vpack.c.bf16 %v1578, %v1578
        %v1583 = vpack.c.bf16 %v1579, %v1579
        %v1584 = vpack.c.bf16 %v1580, %v1580
        %v1585 = vpack.c.bf16 %v1581, %v1581
        %v1587 = vsel %vm1353, %v1582, 0
        %vm1589 = vcmask 1043456
        %v1591 = vsel %vm1589, %v1349, 0
        %1593 = vmatprep.subr.bf16.mxu0 0
        %1594 = vmatpush1.bf16.msra.mxu0 %v1591
        %1595 = vmatprep.subr.bf16.mxu0 0
        %1596 = vmatpush1.bf16.msra.mxu0 0
        %1597 = vmatprep.subr.bf16.mxu0 0
        %1598 = vmatpush1.bf16.msra.mxu0 0
        %1599 = vmatprep.subr.bf16.mxu0 0
        %1600 = vmatpush1.bf16.msra.mxu0 0
        %1601 = vmatprep.subr.bf16.mxu0 0
        %1602 = vmatpush1.bf16.msra.mxu0 0
        %1603 = vmatprep.subr.bf16.mxu0 0
        %1604 = vmatpush1.bf16.msra.mxu0 0
        %1605 = vmatprep.subr.bf16.mxu0 0
        %1606 = vmatpush1.bf16.msra.mxu0 0
        %1607 = vmatprep.subr.bf16.mxu0 0
        %1608 = vmatpush1.bf16.msra.mxu0 0
        %1609 = vmatprep.subr.bf16.mxu0 0
        %1610 = vmatpush1.bf16.msra.mxu0 0
        %1611 = vmatprep.subr.bf16.mxu0 0
        %1612 = vmatpush1.bf16.msra.mxu0 0
        %1613 = vmatprep.subr.bf16.mxu0 0
        %1614 = vmatpush1.bf16.msra.mxu0 0
        %1615 = vmatprep.subr.bf16.mxu0 0
        %1616 = vmatpush1.bf16.msra.mxu0 0
        %1617 = vmatprep.subr.bf16.mxu0 0
        %1618 = vmatpush1.bf16.msra.mxu0 0
        %1619 = vmatprep.subr.bf16.mxu0 0
        %1620 = vmatpush1.bf16.msra.mxu0 0
        %1621 = vmatprep.subr.bf16.mxu0 0
        %1622 = vmatpush1.bf16.msra.mxu0 0
        %1623 = vmatprep.subr.bf16.mxu0 0
        %1624 = vmatpush1.bf16.msra.mxu0 0
        %1625 = vmatprep.mubr.bf16.mxu0 0
        %1626 = vmatmul.mubr.bf16.gmra.mrb[0].mxu0 %v1587
        %v1627 = vpop.f32.mrb[0].mxu0
        %v1628 = vadd.f32 0.0, %v1627
        %v1629 = vpop.f32.mrb[0].mxu0
        %v1630 = vpop.f32.mrb[0].mxu0
        %v1631 = vpop.f32.mrb[0].mxu0
        %1632 = vdwg.mxu0
        %v1634 = vsel %vm1353, %v1583, 0
        %v1637 = vsel %vm1589, %v1350, 0
        %1639 = vmatprep.subr.bf16.mxu0 0
        %1640 = vmatpush1.bf16.msra.mxu0 %v1637
        %1641 = vmatprep.subr.bf16.mxu0 0
        %1642 = vmatpush1.bf16.msra.mxu0 0
        %1643 = vmatprep.subr.bf16.mxu0 0
        %1644 = vmatpush1.bf16.msra.mxu0 0
        %1645 = vmatprep.subr.bf16.mxu0 0
        %1646 = vmatpush1.bf16.msra.mxu0 0
        %1647 = vmatprep.subr.bf16.mxu0 0
        %1648 = vmatpush1.bf16.msra.mxu0 0
        %1649 = vmatprep.subr.bf16.mxu0 0
        %1650 = vmatpush1.bf16.msra.mxu0 0
        %1651 = vmatprep.subr.bf16.mxu0 0
        %1652 = vmatpush1.bf16.msra.mxu0 0
        %1653 = vmatprep.subr.bf16.mxu0 0
        %1654 = vmatpush1.bf16.msra.mxu0 0
        %1655 = vmatprep.subr.bf16.mxu0 0
        %1656 = vmatpush1.bf16.msra.mxu0 0
        %1657 = vmatprep.subr.bf16.mxu0 0
        %1658 = vmatpush1.bf16.msra.mxu0 0
        %1659 = vmatprep.subr.bf16.mxu0 0
        %1660 = vmatpush1.bf16.msra.mxu0 0
        %1661 = vmatprep.subr.bf16.mxu0 0
        %1662 = vmatpush1.bf16.msra.mxu0 0
        %1663 = vmatprep.subr.bf16.mxu0 0
        %1664 = vmatpush1.bf16.msra.mxu0 0
        %1665 = vmatprep.subr.bf16.mxu0 0
        %1666 = vmatpush1.bf16.msra.mxu0 0
        %1667 = vmatprep.subr.bf16.mxu0 0
        %1668 = vmatpush1.bf16.msra.mxu0 0
        %1669 = vmatprep.subr.bf16.mxu0 0
        %1670 = vmatpush1.bf16.msra.mxu0 0
        %1671 = vmatprep.mubr.bf16.mxu0 0
        %1672 = vmatmul.mubr.bf16.gmra.mrb[0].mxu0 %v1634
        %v1673 = vpop.f32.mrb[0].mxu0
        %v1674 = vadd.f32 0.0, %v1673
        %v1675 = vpop.f32.mrb[0].mxu0
        %v1676 = vpop.f32.mrb[0].mxu0
        %v1677 = vpop.f32.mrb[0].mxu0
        %1678 = vdwg.mxu0
        %v1680 = vsel %vm1353, %v1584, 0
        %v1683 = vsel %vm1589, %v1351, 0
        %1685 = vmatprep.subr.bf16.mxu0 0
        %1686 = vmatpush1.bf16.msra.mxu0 %v1683
        %1687 = vmatprep.subr.bf16.mxu0 0
        %1688 = vmatpush1.bf16.msra.mxu0 0
        %1689 = vmatprep.subr.bf16.mxu0 0
        %1690 = vmatpush1.bf16.msra.mxu0 0
        %1691 = vmatprep.subr.bf16.mxu0 0
        %1692 = vmatpush1.bf16.msra.mxu0 0
        %1693 = vmatprep.subr.bf16.mxu0 0
        %1694 = vmatpush1.bf16.msra.mxu0 0
        %1695 = vmatprep.subr.bf16.mxu0 0
        %1696 = vmatpush1.bf16.msra.mxu0 0
        %1697 = vmatprep.subr.bf16.mxu0 0
        %1698 = vmatpush1.bf16.msra.mxu0 0
        %1699 = vmatprep.subr.bf16.mxu0 0
        %1700 = vmatpush1.bf16.msra.mxu0 0
        %1701 = vmatprep.subr.bf16.mxu0 0
        %1702 = vmatpush1.bf16.msra.mxu0 0
        %1703 = vmatprep.subr.bf16.mxu0 0
        %1704 = vmatpush1.bf16.msra.mxu0 0
        %1705 = vmatprep.subr.bf16.mxu0 0
        %1706 = vmatpush1.bf16.msra.mxu0 0
        %1707 = vmatprep.subr.bf16.mxu0 0
        %1708 = vmatpush1.bf16.msra.mxu0 0
        %1709 = vmatprep.subr.bf16.mxu0 0
        %1710 = vmatpush1.bf16.msra.mxu0 0
        %1711 = vmatprep.subr.bf16.mxu0 0
        %1712 = vmatpush1.bf16.msra.mxu0 0
        %1713 = vmatprep.subr.bf16.mxu0 0
        %1714 = vmatpush1.bf16.msra.mxu0 0
        %1715 = vmatprep.subr.bf16.mxu0 0
        %1716 = vmatpush1.bf16.msra.mxu0 0
        %1717 = vmatprep.mubr.bf16.mxu0 0
        %1718 = vmatmul.mubr.bf16.gmra.mrb[0].mxu0 %v1680
        %v1719 = vpop.f32.mrb[0].mxu0
        %v1720 = vadd.f32 0.0, %v1719
        %v1721 = vpop.f32.mrb[0].mxu0
        %v1722 = vpop.f32.mrb[0].mxu0
        %v1723 = vpop.f32.mrb[0].mxu0
        %1724 = vdwg.mxu0
        %v1726 = vsel %vm1353, %v1585, 0
        %v1729 = vsel %vm1589, %v1352, 0
        %1731 = vmatprep.subr.bf16.mxu0 0
        %1732 = vmatpush1.bf16.msra.mxu0 %v1729
        %1733 = vmatprep.subr.bf16.mxu0 0
        %1734 = vmatpush1.bf16.msra.mxu0 0
        %1735 = vmatprep.subr.bf16.mxu0 0
        %1736 = vmatpush1.bf16.msra.mxu0 0
        %1737 = vmatprep.subr.bf16.mxu0 0
        %1738 = vmatpush1.bf16.msra.mxu0 0
        %1739 = vmatprep.subr.bf16.mxu0 0
        %1740 = vmatpush1.bf16.msra.mxu0 0
        %1741 = vmatprep.subr.bf16.mxu0 0
        %1742 = vmatpush1.bf16.msra.mxu0 0
        %1743 = vmatprep.subr.bf16.mxu0 0
        %1744 = vmatpush1.bf16.msra.mxu0 0
        %1745 = vmatprep.subr.bf16.mxu0 0
        %1746 = vmatpush1.bf16.msra.mxu0 0
        %1747 = vmatprep.subr.bf16.mxu0 0
        %1748 = vmatpush1.bf16.msra.mxu0 0
        %1749 = vmatprep.subr.bf16.mxu0 0
        %1750 = vmatpush1.bf16.msra.mxu0 0
        %1751 = vmatprep.subr.bf16.mxu0 0
        %1752 = vmatpush1.bf16.msra.mxu0 0
        %1753 = vmatprep.subr.bf16.mxu0 0
        %1754 = vmatpush1.bf16.msra.mxu0 0
        %1755 = vmatprep.subr.bf16.mxu0 0
        %1756 = vmatpush1.bf16.msra.mxu0 0
        %1757 = vmatprep.subr.bf16.mxu0 0
        %1758 = vmatpush1.bf16.msra.mxu0 0
        %1759 = vmatprep.subr.bf16.mxu0 0
        %1760 = vmatpush1.bf16.msra.mxu0 0
        %1761 = vmatprep.subr.bf16.mxu0 0
        %1762 = vmatpush1.bf16.msra.mxu0 0
        %1763 = vmatprep.mubr.bf16.mxu0 0
        %1764 = vmatmul.mubr.bf16.gmra.mrb[0].mxu0 %v1726
        %v1765 = vpop.f32.mrb[0].mxu0
        %v1766 = vadd.f32 0.0, %v1765
        %v1767 = vpop.f32.mrb[0].mxu0
        %v1768 = vpop.f32.mrb[0].mxu0
        %v1769 = vpop.f32.mrb[0].mxu0
        %1770 = vdwg.mxu0
        %v1771 = vpack.c.bf16 %v1628, %v1628
        %v1772 = vpack.c.bf16 %v1674, %v1674
        %v1773 = vpack.c.bf16 %v1720, %v1720
        %v1774 = vpack.c.bf16 %v1766, %v1766
        %v1775 = vld [vmem:[%s9] sm:$0xf]
        %v1776 = vld [vmem:[%s9 + $0x4] sm:$0xf]
        %v1777 = vld [vmem:[%s9 + $0x8] sm:$0xf]
        %v1778 = vld [vmem:[%s9 + $0xc] sm:$0xf]
        %v1780 = vsel %vm1353, %v1771, 0
        %v1783 = vsel %vm1589, %v1775, 0
        %1785 = vmatprep.subr.bf16.mxu0 0
        %1786 = vmatpush1.bf16.msra.mxu0 %v1783
        %1787 = vmatprep.subr.bf16.mxu0 0
        %1788 = vmatpush1.bf16.msra.mxu0 0
        %1789 = vmatprep.subr.bf16.mxu0 0
        %1790 = vmatpush1.bf16.msra.mxu0 0
        %1791 = vmatprep.subr.bf16.mxu0 0
        %1792 = vmatpush1.bf16.msra.mxu0 0
        %1793 = vmatprep.subr.bf16.mxu0 0
        %1794 = vmatpush1.bf16.msra.mxu0 0
        %1795 = vmatprep.subr.bf16.mxu0 0
        %1796 = vmatpush1.bf16.msra.mxu0 0
        %1797 = vmatprep.subr.bf16.mxu0 0
        %1798 = vmatpush1.bf16.msra.mxu0 0
        %1799 = vmatprep.subr.bf16.mxu0 0
        %1800 = vmatpush1.bf16.msra.mxu0 0
        %1801 = vmatprep.subr.bf16.mxu0 0
        %1802 = vmatpush1.bf16.msra.mxu0 0
        %1803 = vmatprep.subr.bf16.mxu0 0
        %1804 = vmatpush1.bf16.msra.mxu0 0
        %1805 = vmatprep.subr.bf16.mxu0 0
        %1806 = vmatpush1.bf16.msra.mxu0 0
        %1807 = vmatprep.subr.bf16.mxu0 0
        %1808 = vmatpush1.bf16.msra.mxu0 0
        %1809 = vmatprep.subr.bf16.mxu0 0
        %1810 = vmatpush1.bf16.msra.mxu0 0
        %1811 = vmatprep.subr.bf16.mxu0 0
        %1812 = vmatpush1.bf16.msra.mxu0 0
        %1813 = vmatprep.subr.bf16.mxu0 0
        %1814 = vmatpush1.bf16.msra.mxu0 0
        %1815 = vmatprep.subr.bf16.mxu0 0
        %1816 = vmatpush1.bf16.msra.mxu0 0
        %1817 = vmatprep.mubr.bf16.mxu0 0
        %1818 = vmatmul.mubr.bf16.gmra.mrb[0].mxu0 %v1780
        %v1819 = vpop.f32.mrb[0].mxu0
        %v1820 = vadd.f32 0.0, %v1819
        %v1821 = vpop.f32.mrb[0].mxu0
        %v1822 = vpop.f32.mrb[0].mxu0
        %v1823 = vpop.f32.mrb[0].mxu0
        %1824 = vdwg.mxu0
        %v1826 = vsel %vm1353, %v1772, 0
        %v1829 = vsel %vm1589, %v1776, 0
        %1831 = vmatprep.subr.bf16.mxu0 0
        %1832 = vmatpush1.bf16.msra.mxu0 %v1829
        %1833 = vmatprep.subr.bf16.mxu0 0
        %1834 = vmatpush1.bf16.msra.mxu0 0
        %1835 = vmatprep.subr.bf16.mxu0 0
        %1836 = vmatpush1.bf16.msra.mxu0 0
        %1837 = vmatprep.subr.bf16.mxu0 0
        %1838 = vmatpush1.bf16.msra.mxu0 0
        %1839 = vmatprep.subr.bf16.mxu0 0
        %1840 = vmatpush1.bf16.msra.mxu0 0
        %1841 = vmatprep.subr.bf16.mxu0 0
        %1842 = vmatpush1.bf16.msra.mxu0 0
        %1843 = vmatprep.subr.bf16.mxu0 0
        %1844 = vmatpush1.bf16.msra.mxu0 0
        %1845 = vmatprep.subr.bf16.mxu0 0
        %1846 = vmatpush1.bf16.msra.mxu0 0
        %1847 = vmatprep.subr.bf16.mxu0 0
        %1848 = vmatpush1.bf16.msra.mxu0 0
        %1849 = vmatprep.subr.bf16.mxu0 0
        %1850 = vmatpush1.bf16.msra.mxu0 0
        %1851 = vmatprep.subr.bf16.mxu0 0
        %1852 = vmatpush1.bf16.msra.mxu0 0
        %1853 = vmatprep.subr.bf16.mxu0 0
        %1854 = vmatpush1.bf16.msra.mxu0 0
        %1855 = vmatprep.subr.bf16.mxu0 0
        %1856 = vmatpush1.bf16.msra.mxu0 0
        %1857 = vmatprep.subr.bf16.mxu0 0
        %1858 = vmatpush1.bf16.msra.mxu0 0
        %1859 = vmatprep.subr.bf16.mxu0 0
        %1860 = vmatpush1.bf16.msra.mxu0 0
        %1861 = vmatprep.subr.bf16.mxu0 0
        %1862 = vmatpush1.bf16.msra.mxu0 0
        %1863 = vmatprep.mubr.bf16.mxu0 0
        %1864 = vmatmul.mubr.bf16.gmra.mrb[0].mxu0 %v1826
        %v1865 = vpop.f32.mrb[0].mxu0
        %v1866 = vadd.f32 0.0, %v1865
        %v1867 = vpop.f32.mrb[0].mxu0
        %v1868 = vpop.f32.mrb[0].mxu0
        %v1869 = vpop.f32.mrb[0].mxu0
        %1870 = vdwg.mxu0
        %v1872 = vsel %vm1353, %v1773, 0
        %v1875 = vsel %vm1589, %v1777, 0
        %1877 = vmatprep.subr.bf16.mxu0 0
        %1878 = vmatpush1.bf16.msra.mxu0 %v1875
        %1879 = vmatprep.subr.bf16.mxu0 0
        %1880 = vmatpush1.bf16.msra.mxu0 0
        %1881 = vmatprep.subr.bf16.mxu0 0
        %1882 = vmatpush1.bf16.msra.mxu0 0
        %1883 = vmatprep.subr.bf16.mxu0 0
        %1884 = vmatpush1.bf16.msra.mxu0 0
        %1885 = vmatprep.subr.bf16.mxu0 0
        %1886 = vmatpush1.bf16.msra.mxu0 0
        %1887 = vmatprep.subr.bf16.mxu0 0
        %1888 = vmatpush1.bf16.msra.mxu0 0
        %1889 = vmatprep.subr.bf16.mxu0 0
        %1890 = vmatpush1.bf16.msra.mxu0 0
        %1891 = vmatprep.subr.bf16.mxu0 0
        %1892 = vmatpush1.bf16.msra.mxu0 0
        %1893 = vmatprep.subr.bf16.mxu0 0
        %1894 = vmatpush1.bf16.msra.mxu0 0
        %1895 = vmatprep.subr.bf16.mxu0 0
        %1896 = vmatpush1.bf16.msra.mxu0 0
        %1897 = vmatprep.subr.bf16.mxu0 0
        %1898 = vmatpush1.bf16.msra.mxu0 0
        %1899 = vmatprep.subr.bf16.mxu0 0
        %1900 = vmatpush1.bf16.msra.mxu0 0
        %1901 = vmatprep.subr.bf16.mxu0 0
        %1902 = vmatpush1.bf16.msra.mxu0 0
        %1903 = vmatprep.subr.bf16.mxu0 0
        %1904 = vmatpush1.bf16.msra.mxu0 0
        %1905 = vmatprep.subr.bf16.mxu0 0
        %1906 = vmatpush1.bf16.msra.mxu0 0
        %1907 = vmatprep.subr.bf16.mxu0 0
        %1908 = vmatpush1.bf16.msra.mxu0 0
        %1909 = vmatprep.mubr.bf16.mxu0 0
        %1910 = vmatmul.mubr.bf16.gmra.mrb[0].mxu0 %v1872
        %v1911 = vpop.f32.mrb[0].mxu0
        %v1912 = vadd.f32 0.0, %v1911
        %v1913 = vpop.f32.mrb[0].mxu0
        %v1914 = vpop.f32.mrb[0].mxu0
        %v1915 = vpop.f32.mrb[0].mxu0
        %1916 = vdwg.mxu0
        %v1918 = vsel %vm1353, %v1774, 0
        %v1921 = vsel %vm1589, %v1778, 0
        %1923 = vmatprep.subr.bf16.mxu0 0
        %1924 = vmatpush1.bf16.msra.mxu0 %v1921
        %1925 = vmatprep.subr.bf16.mxu0 0
        %1926 = vmatpush1.bf16.msra.mxu0 0
        %1927 = vmatprep.subr.bf16.mxu0 0
        %1928 = vmatpush1.bf16.msra.mxu0 0
        %1929 = vmatprep.subr.bf16.mxu0 0
        %1930 = vmatpush1.bf16.msra.mxu0 0
        %1931 = vmatprep.subr.bf16.mxu0 0
        %1932 = vmatpush1.bf16.msra.mxu0 0
        %1933 = vmatprep.subr.bf16.mxu0 0
        %1934 = vmatpush1.bf16.msra.mxu0 0
        %1935 = vmatprep.subr.bf16.mxu0 0
        %1936 = vmatpush1.bf16.msra.mxu0 0
        %1937 = vmatprep.subr.bf16.mxu0 0
        %1938 = vmatpush1.bf16.msra.mxu0 0
        %1939 = vmatprep.subr.bf16.mxu0 0
        %1940 = vmatpush1.bf16.msra.mxu0 0
        %1941 = vmatprep.subr.bf16.mxu0 0
        %1942 = vmatpush1.bf16.msra.mxu0 0
        %1943 = vmatprep.subr.bf16.mxu0 0
        %1944 = vmatpush1.bf16.msra.mxu0 0
        %1945 = vmatprep.subr.bf16.mxu0 0
        %1946 = vmatpush1.bf16.msra.mxu0 0
        %1947 = vmatprep.subr.bf16.mxu0 0
        %1948 = vmatpush1.bf16.msra.mxu0 0
        %1949 = vmatprep.subr.bf16.mxu0 0
        %1950 = vmatpush1.bf16.msra.mxu0 0
        %1951 = vmatprep.subr.bf16.mxu0 0
        %1952 = vmatpush1.bf16.msra.mxu0 0
        %1953 = vmatprep.subr.bf16.mxu0 0
        %1954 = vmatpush1.bf16.msra.mxu0 0
        %1955 = vmatprep.mubr.bf16.mxu0 0
        %1956 = vmatmul.mubr.bf16.gmra.mrb[0].mxu0 %v1918
        %v1957 = vpop.f32.mrb[0].mxu0
        %v1958 = vadd.f32 0.0, %v1957
        %v1959 = vpop.f32.mrb[0].mxu0
        %v1960 = vpop.f32.mrb[0].mxu0
        %v1961 = vpop.f32.mrb[0].mxu0
        %1962 = vdwg.mxu0
        %v1963 = vsel %vm548, %v1820, 0.0
        %v1964 = vsel %vm548, %v1866, 0.0
        %v1965 = vadd.f32 %v1963, %v1964
        %v1966 = vsel %vm548, %v1912, 0.0
        %v1967 = vadd.f32 %v1965, %v1966
        %v1968 = vsel %vm548, %v1958, 0.0
        %v1969 = vadd.f32 %v1967, %v1968
        %v1970 = vld [vmem:[%s10] sm:$0x1]
        %v1972 = vlaneseq
        %v1973 = vshrl.u32 %v1972, 7
        %v1974 = vsub.s32 0, %v1973
        %v1975 = vrot.slane %v1970, %v1974
        %v1977 = vadd.f32 %v1969, %v1975
        %v1978 = vadd.f32 %v545, %v1977
        %v1979 = vld [vmem:[%s11] sm:$0x1]
        %v1980 = vld [vmem:[%s12] sm:$0x1]
        %v1981 = vsel %vm548, %v1978, 0.0
        %1982 = vadd.xlane.f32.xlu0 %v1981
        %v1983 = vpop.xlane.xlu0 %1982
        %v1984 = vmul.f32 %v1983, %v552
        %v1985 = vsub.f32 %v1978, %v1984
        %v1986 = vmul.f32 %v1985, %v1985
        %v1987 = vsel %vm548, %v1986, 0.0
        %1988 = vadd.xlane.f32.xlu0 %v1987
        %v1989 = vpop.xlane.xlu0 %1988
        %v1990 = vmul.f32 %v1989, %v552
        %v1991 = vadd.f32 %v1990, 1e-05
        %v1992 = vrsqrt.pop %v1991
        %v1993 = vmul.f32 %v1985, %v1992
        %v1995 = vlaneseq
        %v1996 = vshrl.u32 %v1995, 7
        %v1997 = vsub.s32 0, %v1996
        %v1998 = vrot.slane %v1979, %v1997
        %v2000 = vmul.f32 %v1993, %v1998
        %v2002 = vlaneseq
        %v2003 = vshrl.u32 %v2002, 7
        %v2004 = vsub.s32 0, %v2003
        %v2005 = vrot.slane %v1980, %v2004
        %v2007 = vadd.f32 %v2000, %v2005
        %v2008 = vpack.c.bf16 %v2007, %v2007
        %v2009 = vld [vmem:[%s13] sm:$0xf]
        %v2010 = vld [vmem:[%s13 + $0x4] sm:$0xf]
        %v2011 = vld [vmem:[%s13 + $0x8] sm:$0xf]
        %v2012 = vld [vmem:[%s13 + $0xc] sm:$0xf]
        %v2013 = vld [vmem:[%s14] sm:$0x1]
        %v2015 = vlaneseq
        %v2016 = vshrl.u32 %v2015, 7
        %v2017 = vsub.s32 0, %v2016
        %v2018 = vrot.slane %v2013, %v2017
        %v2024 = vunpack.c.l.b16 %v2009
        %v2025 = vunpack.c.l.b16 %v2010
        %v2026 = vunpack.c.l.b16 %v2011
        %v2027 = vunpack.c.l.b16 %v2012
        %v2028 = vpack.c.b16 %v2025, %v2024
        %v2029 = vpack.c.b16 %v2027, %v2026
        %v2033 = vsel %vm548, %v2008, 0
        %2035 = vmatprep.subr.bf16.mxu0 0
        %2036 = vmatpush1.bf16.msra.mxu0 %v2028
        %2037 = vmatprep.subr.bf16.mxu0 0
        %2038 = vmatpush1.bf16.msra.mxu0 %v2029
        %2039 = vmatprep.subr.bf16.mxu0 0
        %2040 = vmatpush1.bf16.msra.mxu0 0
        %2041 = vmatprep.subr.bf16.mxu0 0
        %2042 = vmatpush1.bf16.msra.mxu0 0
        %2043 = vmatprep.subr.bf16.mxu0 0
        %2044 = vmatpush1.bf16.msra.mxu0 0
        %2045 = vmatprep.subr.bf16.mxu0 0
        %2046 = vmatpush1.bf16.msra.mxu0 0
        %2047 = vmatprep.subr.bf16.mxu0 0
        %2048 = vmatpush1.bf16.msra.mxu0 0
        %2049 = vmatprep.subr.bf16.mxu0 0
        %2050 = vmatpush1.bf16.msra.mxu0 0
        %2051 = vmatprep.subr.bf16.mxu0 0
        %2052 = vmatpush1.bf16.msra.mxu0 0
        %2053 = vmatprep.subr.bf16.mxu0 0
        %2054 = vmatpush1.bf16.msra.mxu0 0
        %2055 = vmatprep.subr.bf16.mxu0 0
        %2056 = vmatpush1.bf16.msra.mxu0 0
        %2057 = vmatprep.subr.bf16.mxu0 0
        %2058 = vmatpush1.bf16.msra.mxu0 0
        %2059 = vmatprep.subr.bf16.mxu0 0
        %2060 = vmatpush1.bf16.msra.mxu0 0
        %2061 = vmatprep.subr.bf16.mxu0 0
        %2062 = vmatpush1.bf16.msra.mxu0 0
        %2063 = vmatprep.subr.bf16.mxu0 0
        %2064 = vmatpush1.bf16.msra.mxu0 0
        %2065 = vmatprep.subr.bf16.mxu0 0
        %2066 = vmatpush1.bf16.msra.mxu0 0
        %2067 = vmatprep.mubr.bf16.mxu0 0
        %2068 = vmatmul.mubr.bf16.gmra.mrb[0].mxu0 %v2033
        %v2069 = vpop.f32.mrb[0].mxu0
        %v2070 = vadd.f32 %v2018, %v2069
        %v2071 = vpop.f32.mrb[0].mxu0
        %v2072 = vpop.f32.mrb[0].mxu0
        %v2073 = vpop.f32.mrb[0].mxu0
        %2074 = vdwg.mxu0
        %v2075 = vmax.f32 %v2070, 0.0
        %v2076 = vpack.c.bf16 %v2075, %v2075
        %v2077 = vld [vmem:[%s15] sm:$0xf]
        %v2078 = vld [vmem:[%s15 + $0x4] sm:$0xf]
        %v2079 = vld [vmem:[%s15 + $0x8] sm:$0xf]
        %v2080 = vld [vmem:[%s15 + $0xc] sm:$0xf]
        %v2081 = vld [vmem:[%s15 + $0x10] sm:$0xf]
        %v2082 = vld [vmem:[%s15 + $0x14] sm:$0xf]
        %v2083 = vld [vmem:[%s15 + $0x18] sm:$0xf]
        %v2084 = vld [vmem:[%s15 + $0x1c] sm:$0xf]
        %v2085 = vld [vmem:[%s16] sm:$0x1]
        %v2087 = vlaneseq
        %v2088 = vshrl.u32 %v2087, 7
        %v2089 = vsub.s32 0, %v2088
        %v2090 = vrot.slane %v2085, %v2089
        %v2100 = vunpack.c.l.b16 %v2077
        %v2101 = vunpack.c.l.b16 %v2078
        %v2102 = vunpack.c.l.b16 %v2079
        %v2103 = vunpack.c.l.b16 %v2080
        %v2104 = vunpack.c.l.b16 %v2081
        %v2105 = vunpack.c.l.b16 %v2082
        %v2106 = vunpack.c.l.b16 %v2083
        %v2107 = vunpack.c.l.b16 %v2084
        %v2108 = vpack.c.b16 %v2101, %v2100
        %v2109 = vpack.c.b16 %v2103, %v2102
        %v2110 = vpack.c.b16 %v2105, %v2104
        %v2111 = vpack.c.b16 %v2107, %v2106
        %vm2116 = vcmask 523264
        %v2118 = vsel %vm2116, %v2076, 0
        %2120 = vmatprep.subr.bf16.mxu0 0
        %2121 = vmatpush1.bf16.msra.mxu0 %v2108
        %2122 = vmatprep.subr.bf16.mxu0 0
        %2123 = vmatpush1.bf16.msra.mxu0 %v2109
        %2124 = vmatprep.subr.bf16.mxu0 0
        %2125 = vmatpush1.bf16.msra.mxu0 %v2110
        %2126 = vmatprep.subr.bf16.mxu0 0
        %2127 = vmatpush1.bf16.msra.mxu0 %v2111
        %2128 = vmatprep.subr.bf16.mxu0 0
        %2129 = vmatpush1.bf16.msra.mxu0 0
        %2130 = vmatprep.subr.bf16.mxu0 0
        %2131 = vmatpush1.bf16.msra.mxu0 0
        %2132 = vmatprep.subr.bf16.mxu0 0
        %2133 = vmatpush1.bf16.msra.mxu0 0
        %2134 = vmatprep.subr.bf16.mxu0 0
        %2135 = vmatpush1.bf16.msra.mxu0 0
        %2136 = vmatprep.subr.bf16.mxu0 0
        %2137 = vmatpush1.bf16.msra.mxu0 0
        %2138 = vmatprep.subr.bf16.mxu0 0
        %2139 = vmatpush1.bf16.msra.mxu0 0
        %2140 = vmatprep.subr.bf16.mxu0 0
        %2141 = vmatpush1.bf16.msra.mxu0 0
        %2142 = vmatprep.subr.bf16.mxu0 0
        %2143 = vmatpush1.bf16.msra.mxu0 0
        %2144 = vmatprep.subr.bf16.mxu0 0
        %2145 = vmatpush1.bf16.msra.mxu0 0
        %2146 = vmatprep.subr.bf16.mxu0 0
        %2147 = vmatpush1.bf16.msra.mxu0 0
        %2148 = vmatprep.subr.bf16.mxu0 0
        %2149 = vmatpush1.bf16.msra.mxu0 0
        %2150 = vmatprep.subr.bf16.mxu0 0
        %2151 = vmatpush1.bf16.msra.mxu0 0
        %2152 = vmatprep.mubr.bf16.mxu0 0
        %2153 = vmatmul.mubr.bf16.gmra.mrb[0].mxu0 %v2118
        %v2154 = vpop.f32.mrb[0].mxu0
        %v2155 = vadd.f32 %v2090, %v2154
        %v2156 = vpop.f32.mrb[0].mxu0
        %v2157 = vpop.f32.mrb[0].mxu0
        %v2158 = vpop.f32.mrb[0].mxu0
        %2159 = vdwg.mxu0
        %v2160 = vadd.f32 %v1978, %v2155
        %2161 = vst.msk [vmem:[%s539] sm:$0xff] %vm548, %v2160
        %s2162 = sand.u32 %s401, 1
        %s2163 = scalar_lea.sflag [#allocation3], %s2162
        %s2164 = sand.u32 %s401, 1
        %s2165 = smul.addr %s2164, 8
        %s2166 = scalar_lea.vmem [#allocation2], %s2165
        // Predicated region
        $region89: #{tpu_custom_call.1} parent=87 // pred_check
          %p2167 = pneg %p411
        $region90: #{tpu_custom_call.1} parent=87 // pred_check_branch
          %2169 = sbr.rel (%p2167) target = $region92
        $region91: #{tpu_custom_call.1} parent=87 // pred_region
          %s2171 = ssub.s32 128, 128
          %2172 = vsyncadd %s2163, %s2171
          %s2173 = smul.addr %s31, 128
          %s2174 = scalar_lea.hbm %s17, %s2173
          %s2176 = sshll.u32 %s2166, 4
          %s2177 = int_to_ptr.vmem [resolvable:$true] %s2176
          %2179 = dma.vmem_to_hbm [thread:$0]  %s2177, 128, %s2174, %s2163
        $region92: #{tpu_custom_call.1} parent=87 // pred_fallthru
          _
      $region88: #{tpu_custom_call.1} parent=5 // pred_fallthru
        _
      %p2180 = scmp.le.s32.totalorder 2, %s26
      // Predicated region
      $region93: #{tpu_custom_call.1} parent=5 // pred_check
        %p2181 = pneg %p2180
      $region94: #{tpu_custom_call.1} parent=5 // pred_check_branch
        %2183 = sbr.rel (%p2181) target = $region96
      $region95: #{tpu_custom_call.1} parent=5 // pred_region
        %s2184 = ssub.s32 %s26, 2
        // Predicated region
        $region97: #{tpu_custom_call.1} parent=95 // pred_check
          %p2185 = pneg %p417
        $region98: #{tpu_custom_call.1} parent=95 // pred_check_branch
          %2187 = sbr.rel (%p2185) target = $region100
        $region99: #{tpu_custom_call.1} parent=95 // pred_region
          %s2188 = sand.u32 %s402, 1
          %s2189 = scalar_lea.sflag [#allocation3], %s2188
          %s2190 = sand.u32 %s402, 1
          %s2191 = smul.addr %s2190, 8
          %s2192 = scalar_lea.vmem [#allocation2], %s2191
          %2193 = dma.done %s2189, 128
        $region100: #{tpu_custom_call.1} parent=95 // pred_fallthru
          _
      $region96: #{tpu_custom_call.1} parent=5 // pred_fallthru
        _
    $region6: #{tpu_custom_call.1} parent=1 // loop_footer
      %s30 = sadd.s32 1, %s26
    $region7: #{tpu_custom_call.1} parent=1 // loop_footer_branch
      %25 = sbr.rel target = $region3
    $region8: #{tpu_custom_call.1} parent=1 // loop_exit
      _
    %2194 = vsyncpa [#allocation3], 1
    %s2195 = scalar_lea.sflag [#allocation3], 1
    %2196 = vsyncpa %s2195, 1

</llo_original>
